<compile_context>
chip_gen: v6e
topology: v6e:2x2x1
jax: 0.10.0
libtpu: 0.0.40
codegen_flags: <defaults>
</compile_context>

<pallas_src>
import functools
import math

import jax
import jax.numpy as jnp
from jax.experimental import pallas as pl
from jax.experimental.pallas import tpu as pltpu


# ------------------------------- config -------------------------------------

class Config:
    hidden_size = 64
    intermediate_size = 128
    num_attention_heads = 4
    num_key_value_heads = 2
    max_position_embeddings = 64
    rope_theta = 10000.0
    rms_norm_eps = 1e-5
    initializer_range = 0.02


# --------------------------- in-kernel helpers -------------------------------

def _rmsnorm(x, w, eps):
    var = jnp.mean(x * x, axis=-1, keepdims=True)
    return (x * jax.lax.rsqrt(var + eps)) * w


# ------------------------------ Pallas kernel --------------------------------

def _block_kernel(x_ref, ln1_ref, ln2_ref, wqkv_ref, wqkv_rot_ref, wo_ref,
                  wgu_ref, wd_ref, cos_ref, sin_ref, o_ref, attn_scr,
                  *, B, S, nh, n_kv, hd, inter, eps):
    R = B * S
    C = (nh + 2 * n_kv) * hd
    n_rep = nh // n_kv
    k_off = nh * hd
    v_off = (nh + n_kv) * hd

    # ---------------- attention half ----------------
    x = x_ref[...].astype(jnp.float32)                              # (R, H)
    h = _rmsnorm(x, ln1_ref[...], eps).astype(jnp.bfloat16)

    # Fused QKV projection (q columns pre-scaled by 1/sqrt(hd)).  The second
    # projection computes rotate_half(qkv) exactly (wqkv_rot = wqkv @ P).
    qkv = jnp.dot(h, wqkv_ref[...], preferred_element_type=jnp.float32)        # (R, C)
    qkv_rot = jnp.dot(h, wqkv_rot_ref[...], preferred_element_type=jnp.float32)

    # (R, C) -> (B, S, C) is a tile-aligned row split (S == 8 sublanes).
    qkv = qkv.reshape(B, S, C)
    qkv_rot = qkv_rot.reshape(B, S, C)
    # RoPE as a single FMA; v columns have cos=1, sin=0 (and qkv_rot == 0
    # there), so V passes through untouched.  Broadcast over batch in-kernel.
    qkv = qkv * cos_ref[...][None] + qkv_rot * sin_ref[...][None]

    # Per-KV-group / per-head attention, batched over B with einsums; head
    # outputs go straight into a VMEM scratch (no list + concatenate).
    for g in range(n_kv):
        kh = qkv[:, :, k_off + g * hd:k_off + (g + 1) * hd].astype(jnp.bfloat16)
        vh = qkv[:, :, v_off + g * hd:v_off + (g + 1) * hd].astype(jnp.bfloat16)
        for r in range(n_rep):
            hi = g * n_rep + r                                      # GQA mapping
            qh = qkv[:, :, hi * hd:(hi + 1) * hd].astype(jnp.bfloat16)
            s = jnp.einsum('bqd,bkd->bqk', qh, kh,
                           preferred_element_type=jnp.float32)      # (B, S, S)
            s = s - jnp.max(s, axis=-1, keepdims=True)
            p = jnp.exp(s)
            p = p * pl.reciprocal(jnp.sum(p, axis=-1, keepdims=True), approx=True)
            oh = jnp.einsum('bqk,bkd->bqd', p.astype(jnp.bfloat16), vh,
                            preferred_element_type=jnp.float32)     # (B, S, hd)
            attn_scr[:, :, hi * hd:(hi + 1) * hd] = oh

    attn = attn_scr[...].reshape(R, nh * hd).astype(jnp.bfloat16)
    x = x + jnp.dot(attn, wo_ref[...], preferred_element_type=jnp.float32)

    # ---------------- MLP half ----------------
    h2 = _rmsnorm(x, ln2_ref[...], eps).astype(jnp.bfloat16)
    gu = jnp.dot(h2, wgu_ref[...], preferred_element_type=jnp.float32)         # (R, 2I)
    gate = gu[:, :inter]
    up = gu[:, inter:]
    mid = (gate * jax.nn.sigmoid(gate) * up).astype(jnp.bfloat16)              # SiLU(g)*u
    mlp = jnp.dot(mid, wd_ref[...], preferred_element_type=jnp.float32)        # (R, H)
    o_ref[...] = (x + mlp).astype(o_ref.dtype)                                 # residual


# ------------------------------ params / glue ---------------------------------

def _rotate_half_matrix(nh, n_kv, hd):
    """Constant matrix P with x @ P == rotate_half(x) per q/k head, 0 for v."""
    half = hd // 2
    eye = jnp.eye(half, dtype=jnp.float32)
    zeros = jnp.zeros((half, half), jnp.float32)
    top = jnp.concatenate([zeros, eye], axis=1)
    bot = jnp.concatenate([-eye, zeros], axis=1)
    p_head = jnp.concatenate([top, bot], axis=0)                    # (hd, hd)
    rope_heads = nh + n_kv
    C = (nh + 2 * n_kv) * hd
    P = jnp.zeros((C, C), jnp.float32)
    P = P.at[:rope_heads * hd, :rope_heads * hd].set(
        jnp.kron(jnp.eye(rope_heads, dtype=jnp.float32), p_head))
    return P


def init_params(cfg, key):
    std = cfg.initializer_range
    H, inter = cfg.hidden_size, cfg.intermediate_size
    nh, n_kv = cfg.num_attention_heads, cfg.num_key_value_heads
    hd = H // nh
    k = jax.random.split(key, 7)
    wq = std * jax.random.normal(k[0], (H, nh * hd), jnp.float32)
    wk = std * jax.random.normal(k[1], (H, n_kv * hd), jnp.float32)
    wv = std * jax.random.normal(k[2], (H, n_kv * hd), jnp.float32)
    wo = std * jax.random.normal(k[3], (nh * hd, H), jnp.float32)
    wg = std * jax.random.normal(k[4], (H, inter), jnp.float32)
    wu = std * jax.random.normal(k[5], (H, inter), jnp.float32)
    wd = std * jax.random.normal(k[6], (inter, H), jnp.float32)

    # Fold 1/sqrt(head_dim) into wq (RoPE is linear, so scaling commutes with
    # it and with the scores).  Fuse projections into lane-dense widths.
    wq = wq / math.sqrt(hd)
    wqkv = jnp.concatenate([wq, wk, wv], axis=1)                    # (H, 128)
    wqkv_rot = wqkv @ _rotate_half_matrix(nh, n_kv, hd)             # rotate_half folded

    return {
        "ln1_w": jnp.ones((1, H), jnp.float32),
        "ln2_w": jnp.ones((1, H), jnp.float32),
        "wqkv": wqkv.astype(jnp.bfloat16),
        "wqkv_rot": wqkv_rot.astype(jnp.bfloat16),
        "wo": wo.astype(jnp.bfloat16),
        "wgu": jnp.concatenate([wg, wu], axis=1).astype(jnp.bfloat16),   # (H, 256)
        "wd": wd.astype(jnp.bfloat16),
    }


def rope_tables(seq_len, dim, base):
    inv_freq = 1.0 / (base ** (jnp.arange(0, dim, 2, dtype=jnp.float32) / dim))
    t = jnp.arange(seq_len, dtype=jnp.float32)
    freqs = jnp.einsum("i,j->ij", t, inv_freq)                      # (S, dim/2)
    emb = jnp.concatenate([freqs, freqs], axis=-1)                  # (S, dim)
    return jnp.cos(emb), jnp.sin(emb)


def smollm2_block_forward(params, hidden_states, cfg):
    B, S, H = hidden_states.shape
    nh = cfg.num_attention_heads
    n_kv = cfg.num_key_value_heads
    hd = H // nh
    inter = cfg.intermediate_size
    eps = cfg.rms_norm_eps
    C = (nh + 2 * n_kv) * hd

    # Compact (S, C) cos/sin tables: tiled per q/k head, cos=1 / sin=0 on the
    # v columns.  No per-batch replication (broadcast happens in the kernel).
    cos, sin = rope_tables(S, hd, cfg.rope_theta)                   # (S, hd)
    cos_full = jnp.concatenate(
        [jnp.tile(cos, (1, nh + n_kv)), jnp.ones((S, n_kv * hd), jnp.float32)], axis=-1)
    sin_full = jnp.concatenate(
        [jnp.tile(sin, (1, nh + n_kv)), jnp.zeros((S, n_kv * hd), jnp.float32)], axis=-1)

    x2d = hidden_states.reshape(B * S, H)                           # row-major flatten

    kernel = functools.partial(_block_kernel, B=B, S=S, nh=nh, n_kv=n_kv,
                               hd=hd, inter=inter, eps=eps)
    flops = (2 * B * S * (2 * H * C + H * H + 3 * H * inter)
             + 4 * B * nh * S * S * hd)
    out = pl.pallas_call(
        kernel,
        out_shape=jax.ShapeDtypeStruct((B * S, H), jnp.float32),
        in_specs=[pl.BlockSpec(memory_space=pltpu.MemorySpace.VMEM)] * 10,
        out_specs=pl.BlockSpec(memory_space=pltpu.MemorySpace.VMEM),
        scratch_shapes=[pltpu.VMEM((B, S, nh * hd), jnp.float32)],
        cost_estimate=pl.CostEstimate(
            flops=flops,
            transcendentals=B * nh * S * S + B * S * inter + 2 * B * S,
            bytes_accessed=(8 * B * S * H
                            + 2 * (2 * H * C + H * H + 3 * H * inter)
                            + 8 * S * C),
        ),
    )(x2d, params["ln1_w"], params["ln2_w"], params["wqkv"],
      params["wqkv_rot"], params["wo"], params["wgu"], params["wd"],
      cos_full, sin_full)
    return out.reshape(B, S, H)


# --------------------------------- main ---------------------------------------

if __name__ == "__main__":
    cfg = Config()
    key = jax.random.PRNGKey(0)
    pkey, xkey = jax.random.split(key)
    params = init_params(cfg, pkey)

    B, S = 2, 8
    hidden_states = jax.random.normal(xkey, (B, S, cfg.hidden_size), jnp.float32)

    fwd = jax.jit(functools.partial(smollm2_block_forward, cfg=cfg))
    out = jax.block_until_ready(fwd(params, hidden_states))

    assert out.shape == (B, S, cfg.hidden_size)
    assert bool(jnp.all(jnp.isfinite(out)))
    print("KERNEL_OK")
</pallas_src>

<mosaic_0001>
module attributes {stable_mosaic.version = 11 : i64} {
  func.func @_block_kernel(%arg0: memref<16x64xf32, #tpu.memory_space<vmem>>, %arg1: memref<1x64xf32, #tpu.memory_space<vmem>>, %arg2: memref<1x64xf32, #tpu.memory_space<vmem>>, %arg3: memref<64x128xbf16, #tpu.memory_space<vmem>>, %arg4: memref<64x128xbf16, #tpu.memory_space<vmem>>, %arg5: memref<64x64xbf16, #tpu.memory_space<vmem>>, %arg6: memref<64x256xbf16, #tpu.memory_space<vmem>>, %arg7: memref<128x64xbf16, #tpu.memory_space<vmem>>, %arg8: memref<8x128xf32, #tpu.memory_space<vmem>>, %arg9: memref<8x128xf32, #tpu.memory_space<vmem>>, %arg10: memref<16x64xf32, #tpu.memory_space<vmem>>, %arg11: memref<2x8x64xf32, #tpu.memory_space<vmem>>) attributes {dimension_semantics = [], scalar_prefetch = 0 : i64, scratch_operands = 1 : i64, tpu.core_type = #tpu.core_type<tc>} {
    %c0 = arith.constant 0 : index
    %c0_0 = arith.constant 0 : index
    %0 = vector.load %arg0[%c0, %c0_0] : memref<16x64xf32, #tpu.memory_space<vmem>>, vector<16x64xf32>
    %c0_1 = arith.constant 0 : index
    %c0_2 = arith.constant 0 : index
    %1 = vector.load %arg1[%c0_1, %c0_2] : memref<1x64xf32, #tpu.memory_space<vmem>>, vector<1x64xf32>
    %2 = arith.mulf %0, %0 : vector<16x64xf32>
    %cst = arith.constant dense<0.000000e+00> : vector<16xf32>
    %3 = vector.multi_reduction <add>, %2, %cst [1] : vector<16x64xf32> to vector<16xf32>
    %4 = vector.shape_cast %3 : vector<16xf32> to vector<16x1xf32>
    %cst_3 = arith.constant 6.400000e+01 : f32
    %5 = vector.broadcast %cst_3 : f32 to vector<16x1xf32>
    %6 = arith.divf %4, %5 : vector<16x1xf32>
    %cst_4 = arith.constant 9.99999974E-6 : f32
    %7 = vector.broadcast %cst_4 : f32 to vector<16x1xf32>
    %8 = arith.addf %6, %7 : vector<16x1xf32>
    %9 = math.rsqrt %8 : vector<16x1xf32>
    %10 = vector.broadcast %9 : vector<16x1xf32> to vector<16x64xf32>
    %11 = arith.mulf %0, %10 : vector<16x64xf32>
    %12 = vector.broadcast %1 : vector<1x64xf32> to vector<16x64xf32>
    %13 = arith.mulf %11, %12 : vector<16x64xf32>
    %14 = arith.truncf %13 : vector<16x64xf32> to vector<16x64xbf16>
    %c0_5 = arith.constant 0 : index
    %c0_6 = arith.constant 0 : index
    %15 = vector.load %arg3[%c0_5, %c0_6] : memref<64x128xbf16, #tpu.memory_space<vmem>>, vector<64x128xbf16>
    %cst_7 = arith.constant dense<0.000000e+00> : vector<16x128xf32>
    %16 = tpu.matmul %14, %15, %cst_7 {dimension_numbers = #tpu.dot_dimension_numbers<[1], [0], [0], [1], [0, 0, 1, 1], [], []>} : vector<16x64xbf16>, vector<64x128xbf16>, vector<16x128xf32> -> vector<16x128xf32>
    %c0_8 = arith.constant 0 : index
    %c0_9 = arith.constant 0 : index
    %17 = vector.load %arg4[%c0_8, %c0_9] : memref<64x128xbf16, #tpu.memory_space<vmem>>, vector<64x128xbf16>
    %cst_10 = arith.constant dense<0.000000e+00> : vector<16x128xf32>
    %18 = tpu.matmul %14, %17, %cst_10 {dimension_numbers = #tpu.dot_dimension_numbers<[1], [0], [0], [1], [0, 0, 1, 1], [], []>} : vector<16x64xbf16>, vector<64x128xbf16>, vector<16x128xf32> -> vector<16x128xf32>
    %19 = vector.shape_cast %16 : vector<16x128xf32> to vector<2x8x128xf32>
    %20 = vector.shape_cast %18 : vector<16x128xf32> to vector<2x8x128xf32>
    %c0_11 = arith.constant 0 : index
    %c0_12 = arith.constant 0 : index
    %21 = vector.load %arg8[%c0_11, %c0_12] : memref<8x128xf32, #tpu.memory_space<vmem>>, vector<8x128xf32>
    %22 = vector.shape_cast %21 : vector<8x128xf32> to vector<1x8x128xf32>
    %23 = vector.broadcast %22 : vector<1x8x128xf32> to vector<2x8x128xf32>
    %24 = arith.mulf %19, %23 : vector<2x8x128xf32>
    %c0_13 = arith.constant 0 : index
    %c0_14 = arith.constant 0 : index
    %25 = vector.load %arg9[%c0_13, %c0_14] : memref<8x128xf32, #tpu.memory_space<vmem>>, vector<8x128xf32>
    %26 = vector.shape_cast %25 : vector<8x128xf32> to vector<1x8x128xf32>
    %27 = vector.broadcast %26 : vector<1x8x128xf32> to vector<2x8x128xf32>
    %28 = arith.mulf %20, %27 : vector<2x8x128xf32>
    %29 = arith.addf %24, %28 : vector<2x8x128xf32>
    %30 = vector.extract_strided_slice %29 {offsets = [0, 0, 64], sizes = [2, 8, 16], strides = [1, 1, 1]} : vector<2x8x128xf32> to vector<2x8x16xf32>
    %31 = arith.truncf %30 : vector<2x8x16xf32> to vector<2x8x16xbf16>
    %32 = vector.extract_strided_slice %29 {offsets = [0, 0, 96], sizes = [2, 8, 16], strides = [1, 1, 1]} : vector<2x8x128xf32> to vector<2x8x16xf32>
    %33 = arith.truncf %32 : vector<2x8x16xf32> to vector<2x8x16xbf16>
    %34 = vector.extract_strided_slice %29 {offsets = [0, 0, 0], sizes = [2, 8, 16], strides = [1, 1, 1]} : vector<2x8x128xf32> to vector<2x8x16xf32>
    %35 = arith.truncf %34 : vector<2x8x16xf32> to vector<2x8x16xbf16>
    "tpu.trace_start"() <{level = 10 : i32, message = "bqd,bkd->bqk"}> : () -> ()
    %cst_15 = arith.constant dense<0.000000e+00> : vector<2x8x8xf32>
    %36 = tpu.matmul %35, %31, %cst_15 {dimension_numbers = #tpu.dot_dimension_numbers<[2], [2], [1], [1], [0, 0, 0, 1, 1, 1], [0], [0]>} : vector<2x8x16xbf16>, vector<2x8x16xbf16>, vector<2x8x8xf32> -> vector<2x8x8xf32>
    "tpu.trace_stop"() : () -> ()
    %cst_16 = arith.constant dense<0xFF800000> : vector<2x8xf32>
    %37 = vector.multi_reduction <maximumf>, %36, %cst_16 [2] : vector<2x8x8xf32> to vector<2x8xf32>
    %38 = vector.shape_cast %37 : vector<2x8xf32> to vector<2x8x1xf32>
    %39 = vector.broadcast %38 : vector<2x8x1xf32> to vector<2x8x8xf32>
    %40 = arith.subf %36, %39 : vector<2x8x8xf32>
    %41 = math.exp %40 : vector<2x8x8xf32>
    %cst_17 = arith.constant dense<0.000000e+00> : vector<2x8xf32>
    %42 = vector.multi_reduction <add>, %41, %cst_17 [2] : vector<2x8x8xf32> to vector<2x8xf32>
    %43 = vector.shape_cast %42 : vector<2x8xf32> to vector<2x8x1xf32>
    %44 = tpu.reciprocal %43 {approx = true} : vector<2x8x1xf32> -> vector<2x8x1xf32>
    %45 = vector.broadcast %44 : vector<2x8x1xf32> to vector<2x8x8xf32>
    %46 = arith.mulf %41, %45 : vector<2x8x8xf32>
    %47 = arith.truncf %46 : vector<2x8x8xf32> to vector<2x8x8xbf16>
    "tpu.trace_start"() <{level = 10 : i32, message = "bqk,bkd->bqd"}> : () -> ()
    %cst_18 = arith.constant dense<0.000000e+00> : vector<2x8x16xf32>
    %48 = tpu.matmul %47, %33, %cst_18 {dimension_numbers = #tpu.dot_dimension_numbers<[2], [1], [1], [2], [0, 0, 0, 1, 1, 2], [0], [0]>} : vector<2x8x8xbf16>, vector<2x8x16xbf16>, vector<2x8x16xf32> -> vector<2x8x16xf32>
    "tpu.trace_stop"() : () -> ()
    %c0_19 = arith.constant 0 : index
    %c0_20 = arith.constant 0 : index
    %c0_21 = arith.constant 0 : index
    %49 = vector.load %arg11[%c0_19, %c0_20, %c0_21] : memref<2x8x64xf32, #tpu.memory_space<vmem>>, vector<2x8x16xf32>
    tpu.vector_store %arg11[%c0_19, %c0_20, %c0_21], %48 {strides = array<i32>} : memref<2x8x64xf32, #tpu.memory_space<vmem>>, vector<2x8x16xf32>,
    %50 = vector.extract_strided_slice %29 {offsets = [0, 0, 16], sizes = [2, 8, 16], strides = [1, 1, 1]} : vector<2x8x128xf32> to vector<2x8x16xf32>
    %51 = arith.truncf %50 : vector<2x8x16xf32> to vector<2x8x16xbf16>
    "tpu.trace_start"() <{level = 10 : i32, message = "bqd,bkd->bqk"}> : () -> ()
    %cst_22 = arith.constant dense<0.000000e+00> : vector<2x8x8xf32>
    %52 = tpu.matmul %51, %31, %cst_22 {dimension_numbers = #tpu.dot_dimension_numbers<[2], [2], [1], [1], [0, 0, 0, 1, 1, 1], [0], [0]>} : vector<2x8x16xbf16>, vector<2x8x16xbf16>, vector<2x8x8xf32> -> vector<2x8x8xf32>
    "tpu.trace_stop"() : () -> ()
    %cst_23 = arith.constant dense<0xFF800000> : vector<2x8xf32>
    %53 = vector.multi_reduction <maximumf>, %52, %cst_23 [2] : vector<2x8x8xf32> to vector<2x8xf32>
    %54 = vector.shape_cast %53 : vector<2x8xf32> to vector<2x8x1xf32>
    %55 = vector.broadcast %54 : vector<2x8x1xf32> to vector<2x8x8xf32>
    %56 = arith.subf %52, %55 : vector<2x8x8xf32>
    %57 = math.exp %56 : vector<2x8x8xf32>
    %cst_24 = arith.constant dense<0.000000e+00> : vector<2x8xf32>
    %58 = vector.multi_reduction <add>, %57, %cst_24 [2] : vector<2x8x8xf32> to vector<2x8xf32>
    %59 = vector.shape_cast %58 : vector<2x8xf32> to vector<2x8x1xf32>
    %60 = tpu.reciprocal %59 {approx = true} : vector<2x8x1xf32> -> vector<2x8x1xf32>
    %61 = vector.broadcast %60 : vector<2x8x1xf32> to vector<2x8x8xf32>
    %62 = arith.mulf %57, %61 : vector<2x8x8xf32>
    %63 = arith.truncf %62 : vector<2x8x8xf32> to vector<2x8x8xbf16>
    "tpu.trace_start"() <{level = 10 : i32, message = "bqk,bkd->bqd"}> : () -> ()
    %cst_25 = arith.constant dense<0.000000e+00> : vector<2x8x16xf32>
    %64 = tpu.matmul %63, %33, %cst_25 {dimension_numbers = #tpu.dot_dimension_numbers<[2], [1], [1], [2], [0, 0, 0, 1, 1, 2], [0], [0]>} : vector<2x8x8xbf16>, vector<2x8x16xbf16>, vector<2x8x16xf32> -> vector<2x8x16xf32>
    "tpu.trace_stop"() : () -> ()
    %c0_26 = arith.constant 0 : index
    %c0_27 = arith.constant 0 : index
    %c16 = arith.constant 16 : index
    %65 = vector.load %arg11[%c0_26, %c0_27, %c16] : memref<2x8x64xf32, #tpu.memory_space<vmem>>, vector<2x8x16xf32>
    tpu.vector_store %arg11[%c0_26, %c0_27, %c16], %64 {strides = array<i32>} : memref<2x8x64xf32, #tpu.memory_space<vmem>>, vector<2x8x16xf32>,
    %66 = vector.extract_strided_slice %29 {offsets = [0, 0, 80], sizes = [2, 8, 16], strides = [1, 1, 1]} : vector<2x8x128xf32> to vector<2x8x16xf32>
    %67 = arith.truncf %66 : vector<2x8x16xf32> to vector<2x8x16xbf16>
    %68 = vector.extract_strided_slice %29 {offsets = [0, 0, 112], sizes = [2, 8, 16], strides = [1, 1, 1]} : vector<2x8x128xf32> to vector<2x8x16xf32>
    %69 = arith.truncf %68 : vector<2x8x16xf32> to vector<2x8x16xbf16>
    %70 = vector.extract_strided_slice %29 {offsets = [0, 0, 32], sizes = [2, 8, 16], strides = [1, 1, 1]} : vector<2x8x128xf32> to vector<2x8x16xf32>
    %71 = arith.truncf %70 : vector<2x8x16xf32> to vector<2x8x16xbf16>
    "tpu.trace_start"() <{level = 10 : i32, message = "bqd,bkd->bqk"}> : () -> ()
    %cst_28 = arith.constant dense<0.000000e+00> : vector<2x8x8xf32>
    %72 = tpu.matmul %71, %67, %cst_28 {dimension_numbers = #tpu.dot_dimension_numbers<[2], [2], [1], [1], [0, 0, 0, 1, 1, 1], [0], [0]>} : vector<2x8x16xbf16>, vector<2x8x16xbf16>, vector<2x8x8xf32> -> vector<2x8x8xf32>
    "tpu.trace_stop"() : () -> ()
    %cst_29 = arith.constant dense<0xFF800000> : vector<2x8xf32>
    %73 = vector.multi_reduction <maximumf>, %72, %cst_29 [2] : vector<2x8x8xf32> to vector<2x8xf32>
    %74 = vector.shape_cast %73 : vector<2x8xf32> to vector<2x8x1xf32>
    %75 = vector.broadcast %74 : vector<2x8x1xf32> to vector<2x8x8xf32>
    %76 = arith.subf %72, %75 : vector<2x8x8xf32>
    %77 = math.exp %76 : vector<2x8x8xf32>
    %cst_30 = arith.constant dense<0.000000e+00> : vector<2x8xf32>
    %78 = vector.multi_reduction <add>, %77, %cst_30 [2] : vector<2x8x8xf32> to vector<2x8xf32>
    %79 = vector.shape_cast %78 : vector<2x8xf32> to vector<2x8x1xf32>
    %80 = tpu.reciprocal %79 {approx = true} : vector<2x8x1xf32> -> vector<2x8x1xf32>
    %81 = vector.broadcast %80 : vector<2x8x1xf32> to vector<2x8x8xf32>
    %82 = arith.mulf %77, %81 : vector<2x8x8xf32>
    %83 = arith.truncf %82 : vector<2x8x8xf32> to vector<2x8x8xbf16>
    "tpu.trace_start"() <{level = 10 : i32, message = "bqk,bkd->bqd"}> : () -> ()
    %cst_31 = arith.constant dense<0.000000e+00> : vector<2x8x16xf32>
    %84 = tpu.matmul %83, %69, %cst_31 {dimension_numbers = #tpu.dot_dimension_numbers<[2], [1], [1], [2], [0, 0, 0, 1, 1, 2], [0], [0]>} : vector<2x8x8xbf16>, vector<2x8x16xbf16>, vector<2x8x16xf32> -> vector<2x8x16xf32>
    "tpu.trace_stop"() : () -> ()
    %c0_32 = arith.constant 0 : index
    %c0_33 = arith.constant 0 : index
    %c32 = arith.constant 32 : index
    %85 = vector.load %arg11[%c0_32, %c0_33, %c32] : memref<2x8x64xf32, #tpu.memory_space<vmem>>, vector<2x8x16xf32>
    tpu.vector_store %arg11[%c0_32, %c0_33, %c32], %84 {strides = array<i32>} : memref<2x8x64xf32, #tpu.memory_space<vmem>>, vector<2x8x16xf32>,
    %86 = vector.extract_strided_slice %29 {offsets = [0, 0, 48], sizes = [2, 8, 16], strides = [1, 1, 1]} : vector<2x8x128xf32> to vector<2x8x16xf32>
    %87 = arith.truncf %86 : vector<2x8x16xf32> to vector<2x8x16xbf16>
    "tpu.trace_start"() <{level = 10 : i32, message = "bqd,bkd->bqk"}> : () -> ()
    %cst_34 = arith.constant dense<0.000000e+00> : vector<2x8x8xf32>
    %88 = tpu.matmul %87, %67, %cst_34 {dimension_numbers = #tpu.dot_dimension_numbers<[2], [2], [1], [1], [0, 0, 0, 1, 1, 1], [0], [0]>} : vector<2x8x16xbf16>, vector<2x8x16xbf16>, vector<2x8x8xf32> -> vector<2x8x8xf32>
    "tpu.trace_stop"() : () -> ()
    %cst_35 = arith.constant dense<0xFF800000> : vector<2x8xf32>
    %89 = vector.multi_reduction <maximumf>, %88, %cst_35 [2] : vector<2x8x8xf32> to vector<2x8xf32>
    %90 = vector.shape_cast %89 : vector<2x8xf32> to vector<2x8x1xf32>
    %91 = vector.broadcast %90 : vector<2x8x1xf32> to vector<2x8x8xf32>
    %92 = arith.subf %88, %91 : vector<2x8x8xf32>
    %93 = math.exp %92 : vector<2x8x8xf32>
    %cst_36 = arith.constant dense<0.000000e+00> : vector<2x8xf32>
    %94 = vector.multi_reduction <add>, %93, %cst_36 [2] : vector<2x8x8xf32> to vector<2x8xf32>
    %95 = vector.shape_cast %94 : vector<2x8xf32> to vector<2x8x1xf32>
    %96 = tpu.reciprocal %95 {approx = true} : vector<2x8x1xf32> -> vector<2x8x1xf32>
    %97 = vector.broadcast %96 : vector<2x8x1xf32> to vector<2x8x8xf32>
    %98 = arith.mulf %93, %97 : vector<2x8x8xf32>
    %99 = arith.truncf %98 : vector<2x8x8xf32> to vector<2x8x8xbf16>
    "tpu.trace_start"() <{level = 10 : i32, message = "bqk,bkd->bqd"}> : () -> ()
    %cst_37 = arith.constant dense<0.000000e+00> : vector<2x8x16xf32>
    %100 = tpu.matmul %99, %69, %cst_37 {dimension_numbers = #tpu.dot_dimension_numbers<[2], [1], [1], [2], [0, 0, 0, 1, 1, 2], [0], [0]>} : vector<2x8x8xbf16>, vector<2x8x16xbf16>, vector<2x8x16xf32> -> vector<2x8x16xf32>
    "tpu.trace_stop"() : () -> ()
    %c0_38 = arith.constant 0 : index
    %c0_39 = arith.constant 0 : index
    %c48 = arith.constant 48 : index
    %101 = vector.load %arg11[%c0_38, %c0_39, %c48] : memref<2x8x64xf32, #tpu.memory_space<vmem>>, vector<2x8x16xf32>
    tpu.vector_store %arg11[%c0_38, %c0_39, %c48], %100 {strides = array<i32>} : memref<2x8x64xf32, #tpu.memory_space<vmem>>, vector<2x8x16xf32>,
    %c0_40 = arith.constant 0 : index
    %c0_41 = arith.constant 0 : index
    %c0_42 = arith.constant 0 : index
    %102 = vector.load %arg11[%c0_40, %c0_41, %c0_42] : memref<2x8x64xf32, #tpu.memory_space<vmem>>, vector<2x8x64xf32>
    %103 = vector.shape_cast %102 : vector<2x8x64xf32> to vector<16x64xf32>
    %104 = arith.truncf %103 : vector<16x64xf32> to vector<16x64xbf16>
    %c0_43 = arith.constant 0 : index
    %c0_44 = arith.constant 0 : index
    %105 = vector.load %arg5[%c0_43, %c0_44] : memref<64x64xbf16, #tpu.memory_space<vmem>>, vector<64x64xbf16>
    %cst_45 = arith.constant dense<0.000000e+00> : vector<16x64xf32>
    %106 = tpu.matmul %104, %105, %cst_45 {dimension_numbers = #tpu.dot_dimension_numbers<[1], [0], [0], [1], [0, 0, 1, 1], [], []>} : vector<16x64xbf16>, vector<64x64xbf16>, vector<16x64xf32> -> vector<16x64xf32>
    %107 = arith.addf %0, %106 : vector<16x64xf32>
    %c0_46 = arith.constant 0 : index
    %c0_47 = arith.constant 0 : index
    %108 = vector.load %arg2[%c0_46, %c0_47] : memref<1x64xf32, #tpu.memory_space<vmem>>, vector<1x64xf32>
    %109 = arith.mulf %107, %107 : vector<16x64xf32>
    %cst_48 = arith.constant dense<0.000000e+00> : vector<16xf32>
    %110 = vector.multi_reduction <add>, %109, %cst_48 [1] : vector<16x64xf32> to vector<16xf32>
    %111 = vector.shape_cast %110 : vector<16xf32> to vector<16x1xf32>
    %cst_49 = arith.constant 6.400000e+01 : f32
    %112 = vector.broadcast %cst_49 : f32 to vector<16x1xf32>
    %113 = arith.divf %111, %112 : vector<16x1xf32>
    %cst_50 = arith.constant 9.99999974E-6 : f32
    %114 = vector.broadcast %cst_50 : f32 to vector<16x1xf32>
    %115 = arith.addf %113, %114 : vector<16x1xf32>
    %116 = math.rsqrt %115 : vector<16x1xf32>
    %117 = vector.broadcast %116 : vector<16x1xf32> to vector<16x64xf32>
    %118 = arith.mulf %107, %117 : vector<16x64xf32>
    %119 = vector.broadcast %108 : vector<1x64xf32> to vector<16x64xf32>
    %120 = arith.mulf %118, %119 : vector<16x64xf32>
    %121 = arith.truncf %120 : vector<16x64xf32> to vector<16x64xbf16>
    %c0_51 = arith.constant 0 : index
    %c0_52 = arith.constant 0 : index
    %122 = vector.load %arg6[%c0_51, %c0_52] : memref<64x256xbf16, #tpu.memory_space<vmem>>, vector<64x256xbf16>
    %cst_53 = arith.constant dense<0.000000e+00> : vector<16x256xf32>
    %123 = tpu.matmul %121, %122, %cst_53 {dimension_numbers = #tpu.dot_dimension_numbers<[1], [0], [0], [1], [0, 0, 1, 1], [], []>} : vector<16x64xbf16>, vector<64x256xbf16>, vector<16x256xf32> -> vector<16x256xf32>
    %124 = vector.extract_strided_slice %123 {offsets = [0, 0], sizes = [16, 128], strides = [1, 1]} : vector<16x256xf32> to vector<16x128xf32>
    %125 = vector.extract_strided_slice %123 {offsets = [0, 128], sizes = [16, 128], strides = [1, 1]} : vector<16x256xf32> to vector<16x128xf32>
    %126 = arith.negf %124 : vector<16x128xf32>
    %127 = math.exp %126 : vector<16x128xf32>
    %cst_54 = arith.constant 1.000000e+00 : f32
    %128 = vector.broadcast %cst_54 : f32 to vector<16x128xf32>
    %129 = arith.addf %128, %127 : vector<16x128xf32>
    %130 = arith.divf %128, %129 : vector<16x128xf32>
    %131 = arith.mulf %124, %130 : vector<16x128xf32>
    %132 = arith.mulf %131, %125 : vector<16x128xf32>
    %133 = arith.truncf %132 : vector<16x128xf32> to vector<16x128xbf16>
    %c0_55 = arith.constant 0 : index
    %c0_56 = arith.constant 0 : index
    %134 = vector.load %arg7[%c0_55, %c0_56] : memref<128x64xbf16, #tpu.memory_space<vmem>>, vector<128x64xbf16>
    %cst_57 = arith.constant dense<0.000000e+00> : vector<16x64xf32>
    %135 = tpu.matmul %133, %134, %cst_57 {dimension_numbers = #tpu.dot_dimension_numbers<[1], [0], [0], [1], [0, 0, 1, 1], [], []>} : vector<16x128xbf16>, vector<128x64xbf16>, vector<16x64xf32> -> vector<16x64xf32>
    %136 = arith.addf %107, %135 : vector<16x64xf32>
    %c0_58 = arith.constant 0 : index
    %c0_59 = arith.constant 0 : index
    %137 = vector.load %arg10[%c0_58, %c0_59] : memref<16x64xf32, #tpu.memory_space<vmem>>, vector<16x64xf32>
    tpu.vector_store %arg10[%c0_58, %c0_59], %136 {strides = array<i32>} : memref<16x64xf32, #tpu.memory_space<vmem>>, vector<16x64xf32>,
    return
  }
}

</mosaic_0001>

<llo_original>
// kernel: tile.19
$region0: #{tile.19}
  %s0 = inlined_call_operand.vmem [shape: f32[8,6,16], index: 0, kind: input, shape index: {}]
  %s1 = inlined_call_operand.vmem [shape: f32[8,96], index: 1, kind: output, shape index: {}]
  %v2 = vld [vmem:[%s0] ss:$8 sm:$0xf]
  %v3 = vld [vmem:[%s0] ss:$8 sm:$0xf0]
  %vm4 = vcmask 1047556
  %v5 = vsel %vm4, %v3, %v2
  %vm6 = vcmask 130048
  %7 = vst.msk [vmem:[%s1] sm:$0xff] %vm6, %v5
  %s8 = scalar_lea.vmem %s0, 5
  %v9 = vld [vmem:[%s8] ss:$8 sm:$0xf]
  %s10 = scalar_lea.vmem %s0, 5
  %v11 = vld [vmem:[%s10] ss:$8 sm:$0xf0]
  %vm12 = vcmask 1047556
  %v13 = vsel %vm12, %v11, %v9
  %14 = vrot.lane.b32.xlu0 %v13, 80
  %v15 = vpop.permute.xlu0 %14
  %vm16 = vcmask 786048
  %17 = vst.msk [vmem:[%s1] sm:$0xff] %vm16, %v15
  %s18 = scalar_lea.vmem %s0, 4
  %v19 = vld [vmem:[%s18] ss:$8 sm:$0xf]
  %s20 = scalar_lea.vmem %s0, 4
  %v21 = vld [vmem:[%s20] ss:$8 sm:$0xf0]
  %vm22 = vcmask 1047556
  %v23 = vsel %vm22, %v21, %v19
  %24 = vrot.lane.b32.xlu0 %v23, 64
  %v25 = vpop.permute.xlu0 %24
  %vm26 = vcmask 654848
  %27 = vst.msk [vmem:[%s1] sm:$0xff] %vm26, %v25
  %s28 = scalar_lea.vmem %s0, 3
  %v29 = vld [vmem:[%s28] ss:$8 sm:$0xf]
  %s30 = scalar_lea.vmem %s0, 3
  %v31 = vld [vmem:[%s30] ss:$8 sm:$0xf0]
  %vm32 = vcmask 1047556
  %v33 = vsel %vm32, %v31, %v29
  %34 = vrot.lane.b32.xlu0 %v33, 48
  %v35 = vpop.permute.xlu0 %34
  %vm36 = vcmask 523648
  %37 = vst.msk [vmem:[%s1] sm:$0xff] %vm36, %v35
  %s38 = scalar_lea.vmem %s0, 2
  %v39 = vld [vmem:[%s38] ss:$8 sm:$0xf]
  %s40 = scalar_lea.vmem %s0, 2
  %v41 = vld [vmem:[%s40] ss:$8 sm:$0xf0]
  %vm42 = vcmask 1047556
  %v43 = vsel %vm42, %v41, %v39
  %44 = vrot.lane.b32.xlu0 %v43, 32
  %v45 = vpop.permute.xlu0 %44
  %vm46 = vcmask 392448
  %47 = vst.msk [vmem:[%s1] sm:$0xff] %vm46, %v45
  %s48 = scalar_lea.vmem %s0, 1
  %v49 = vld [vmem:[%s48] ss:$8 sm:$0xf]
  %s50 = scalar_lea.vmem %s0, 1
  %v51 = vld [vmem:[%s50] ss:$8 sm:$0xf0]
  %vm52 = vcmask 1047556
  %v53 = vsel %vm52, %v51, %v49
  %54 = vrot.lane.b32.xlu0 %v53, 16
  %v55 = vpop.permute.xlu0 %54
  %vm56 = vcmask 261248
  %57 = vst.msk [vmem:[%s1] sm:$0xff] %vm56, %v55

// kernel: smollm2_block_forward.1
$region0: #{smollm2_block_forward.1}
  #allocation0 [shape = 'u32[]', space=smem, size = 0x4, offset = 0x4, fixed_abs, tag = 'smem constant byte address 0x4 - core index']
  #allocation1 [shape = 'u32[144,128]{1,0:T(1,128)}', space=vmem, size = 0x12000, scoped, tag = 'internal scratch']
  #allocation2 [shape = 'f32[2,8,64]{2,1,0:T(8,128)}', space=vmem, size = 0x2000, scoped, tag = 'scratch operand']
  %s0 = inlined_call_operand.vmem [shape: f32[16,64], index: 0, kind: input, shape index: {}]
  %s1 = inlined_call_operand.vmem [shape: f32[1,64], index: 1, kind: input, shape index: {}]
  %s2 = inlined_call_operand.vmem [shape: f32[1,64], index: 2, kind: input, shape index: {}]
  %s3 = inlined_call_operand.vmem [shape: bf16[64,128], index: 3, kind: input, shape index: {}]
  %s4 = inlined_call_operand.vmem [shape: bf16[64,128], index: 4, kind: input, shape index: {}]
  %s5 = inlined_call_operand.vmem [shape: bf16[64,64], index: 5, kind: input, shape index: {}]
  %s6 = inlined_call_operand.vmem [shape: bf16[64,256], index: 6, kind: input, shape index: {}]
  %s7 = inlined_call_operand.vmem [shape: bf16[128,64], index: 7, kind: input, shape index: {}]
  %s8 = inlined_call_operand.vmem [shape: f32[8,128], index: 8, kind: input, shape index: {}]
  %s9 = inlined_call_operand.vmem [shape: f32[8,128], index: 9, kind: input, shape index: {}]
  %s10 = inlined_call_operand.hbm [shape: f32[16,64], index: 10, kind: output, shape index: {}]
  %s11 = sld [smem:[#allocation0]]
  $region50: #{smollm2_block_forward.1} parent=0
    _
  %s13 = ssub.s32 1, %s11
  %s14 = scalar_select 0, %s13, %s11
  $region1: #{smollm2_block_forward.1} parent=0
    #allocation3 [shape = 'u8[8192]{0}', space=vmem, size = 0x2000, scoped, tag = 'output window, operand 0, single buffered']
    #allocation4 [shape = 's32[1]{0}', space=sflag, size = 0x4, scoped, tag = 'scoped memory for smollm2_block_forward.1']
    %15 = vsyncpa [#allocation4], 0
    // Predicated region
    $region2: #{smollm2_block_forward.1} parent=1 // pred_check
      _
    $region3: #{smollm2_block_forward.1} parent=1 // pred_check_branch
      %17 = sbr.rel (0) target = $region5
    $region4: #{smollm2_block_forward.1} parent=1 // pred_region
      _
    $region5: #{smollm2_block_forward.1} parent=1 // pred_fallthru
      _
    // Predicated region
    $region6: #{smollm2_block_forward.1} parent=1 // pred_check
      _
    $region7: #{smollm2_block_forward.1} parent=1 // pred_check_branch
      %19 = sbr.rel (0) target = $region9
    $region8: #{smollm2_block_forward.1} parent=1 // pred_region
      _
    $region9: #{smollm2_block_forward.1} parent=1 // pred_fallthru
      _
    // Predicated region
    $region10: #{smollm2_block_forward.1} parent=1 // pred_check
      _
    $region11: #{smollm2_block_forward.1} parent=1 // pred_check_branch
      %21 = sbr.rel (0) target = $region13
    $region12: #{smollm2_block_forward.1} parent=1 // pred_region
      _
    $region13: #{smollm2_block_forward.1} parent=1 // pred_fallthru
      _
    // Predicated region
    $region14: #{smollm2_block_forward.1} parent=1 // pred_check
      _
    $region15: #{smollm2_block_forward.1} parent=1 // pred_check_branch
      %23 = sbr.rel (0) target = $region17
    $region16: #{smollm2_block_forward.1} parent=1 // pred_region
      _
    $region17: #{smollm2_block_forward.1} parent=1 // pred_fallthru
      _
    // Predicated region
    $region18: #{smollm2_block_forward.1} parent=1 // pred_check
      _
    $region19: #{smollm2_block_forward.1} parent=1 // pred_check_branch
      %25 = sbr.rel (0) target = $region21
    $region20: #{smollm2_block_forward.1} parent=1 // pred_region
      _
    $region21: #{smollm2_block_forward.1} parent=1 // pred_fallthru
      _
    // Predicated region
    $region22: #{smollm2_block_forward.1} parent=1 // pred_check
      _
    $region23: #{smollm2_block_forward.1} parent=1 // pred_check_branch
      %27 = sbr.rel (0) target = $region25
    $region24: #{smollm2_block_forward.1} parent=1 // pred_region
      _
    $region25: #{smollm2_block_forward.1} parent=1 // pred_fallthru
      _
    // Predicated region
    $region26: #{smollm2_block_forward.1} parent=1 // pred_check
      _
    $region27: #{smollm2_block_forward.1} parent=1 // pred_check_branch
      %29 = sbr.rel (0) target = $region29
    $region28: #{smollm2_block_forward.1} parent=1 // pred_region
      _
    $region29: #{smollm2_block_forward.1} parent=1 // pred_fallthru
      _
    // Predicated region
    $region30: #{smollm2_block_forward.1} parent=1 // pred_check
      _
    $region31: #{smollm2_block_forward.1} parent=1 // pred_check_branch
      %31 = sbr.rel (0) target = $region33
    $region32: #{smollm2_block_forward.1} parent=1 // pred_region
      _
    $region33: #{smollm2_block_forward.1} parent=1 // pred_fallthru
      _
    // Predicated region
    $region34: #{smollm2_block_forward.1} parent=1 // pred_check
      _
    $region35: #{smollm2_block_forward.1} parent=1 // pred_check_branch
      %33 = sbr.rel (0) target = $region37
    $region36: #{smollm2_block_forward.1} parent=1 // pred_region
      _
    $region37: #{smollm2_block_forward.1} parent=1 // pred_fallthru
      _
    // Predicated region
    $region38: #{smollm2_block_forward.1} parent=1 // pred_check
      _
    $region39: #{smollm2_block_forward.1} parent=1 // pred_check_branch
      %35 = sbr.rel (0) target = $region41
    $region40: #{smollm2_block_forward.1} parent=1 // pred_region
      _
    $region41: #{smollm2_block_forward.1} parent=1 // pred_fallthru
      _
    %v37 = vld [vmem:[%s0] sm:$0xff]
    %v38 = vld [vmem:[%s0 + $0x8] sm:$0xff]
    %v39 = vld [vmem:[%s1] sm:$0x1]
    %v40 = vmul.f32 %v37, %v37
    %v41 = vmul.f32 %v38, %v38
    %vm42 = vcmask 523264
    %v43 = vsel %vm42, %v40, 0.0
    %44 = vadd.xlane.f32.xlu0 %v43
    %v45 = vpop.xlane.xlu0 %44
    %v46 = vsel %vm42, %v41, 0.0
    %47 = vadd.xlane.f32.xlu0 %v46
    %v48 = vpop.xlane.xlu0 %47
    %v49 = vrcp.pop 64.0
    %v50 = vmul.f32 %v45, %v49
    %v51 = vmul.f32 %v48, %v49
    %v52 = vadd.f32 %v50, 1e-05
    %v53 = vadd.f32 %v51, 1e-05
    %v54 = vrsqrt.pop %v52
    %v55 = vrsqrt.pop %v53
    %v56 = vmul.f32 %v37, %v54
    %v57 = vmul.f32 %v38, %v55
    %v59 = vlaneseq
    %v60 = vshrl.u32 %v59, 7
    %v61 = vsub.s32 0, %v60
    %v62 = vrot.slane %v39, %v61
    %v64 = vmul.f32 %v56, %v62
    %v65 = vmul.f32 %v57, %v62
    %v66 = vpack.c.bf16 %v65, %v64
    %v67 = vld [vmem:[%s3] sm:$0xf]
    %v68 = vld [vmem:[%s3 + $0x4] sm:$0xf]
    %v69 = vld [vmem:[%s3 + $0x8] sm:$0xf]
    %v70 = vld [vmem:[%s3 + $0xc] sm:$0xf]
    %v71 = vld [vmem:[%s3 + $0x10] sm:$0xf]
    %v72 = vld [vmem:[%s3 + $0x14] sm:$0xf]
    %v73 = vld [vmem:[%s3 + $0x18] sm:$0xf]
    %v74 = vld [vmem:[%s3 + $0x1c] sm:$0xf]
    %v83 = vunpack.c.l.b16 %v67
    %v84 = vunpack.c.l.b16 %v68
    %v85 = vunpack.c.l.b16 %v69
    %v86 = vunpack.c.l.b16 %v70
    %v87 = vunpack.c.l.b16 %v71
    %v88 = vunpack.c.l.b16 %v72
    %v89 = vunpack.c.l.b16 %v73
    %v90 = vunpack.c.l.b16 %v74
    %v91 = vpack.c.b16 %v84, %v83
    %v92 = vpack.c.b16 %v86, %v85
    %v93 = vpack.c.b16 %v88, %v87
    %v94 = vpack.c.b16 %v90, %v89
    %v100 = vsel %vm42, %v66, 0
    %102 = vmatprep.subr.bf16.mxu0 0
    %103 = vmatpush1.bf16.msra.mxu0 0
    %104 = vmatprep.subr.bf16.mxu0 0
    %105 = vmatpush1.bf16.msra.mxu0 0
    %106 = vmatprep.subr.bf16.mxu0 0
    %107 = vmatpush1.bf16.msra.mxu0 0
    %108 = vmatprep.subr.bf16.mxu0 0
    %109 = vmatpush1.bf16.msra.mxu0 0
    %110 = vmatprep.subr.bf16.mxu0 0
    %111 = vmatpush1.bf16.msra.mxu0 %v94
    %112 = vmatprep.subr.bf16.mxu0 0
    %113 = vmatpush1.bf16.msra.mxu0 %v93
    %114 = vmatprep.subr.bf16.mxu0 0
    %115 = vmatpush1.bf16.msra.mxu0 %v92
    %116 = vmatprep.subr.bf16.mxu0 0
    %117 = vmatpush1.bf16.msra.mxu0 %v91
    %118 = vmatprep.subr.bf16.mxu0 0
    %119 = vmatpush2.bf16.msra.mxu0 0
    %120 = vmatprep.subr.bf16.mxu0 0
    %121 = vmatpush2.bf16.msra.mxu0 0
    %122 = vmatprep.subr.bf16.mxu0 0
    %123 = vmatpush2.bf16.msra.mxu0 0
    %124 = vmatprep.subr.bf16.mxu0 0
    %125 = vmatpush2.bf16.msra.mxu0 0
    %126 = vmatprep.subr.bf16.mxu0 0
    %127 = vmatpush2.bf16.msra.mxu0 0
    %128 = vmatprep.subr.bf16.mxu0 0
    %129 = vmatpush2.bf16.msra.mxu0 0
    %130 = vmatprep.subr.bf16.mxu0 0
    %131 = vmatpush2.bf16.msra.mxu0 0
    %132 = vmatprep.subr.bf16.mxu0 0
    %133 = vmatpush2.bf16.msra.mxu0 0
    %134 = vmatprep.mubr.bf16.mxu0 0
    %135 = vmatmul.mubr.bf16.gmra.mxu0 %v100
    %v136 = vpop.f32.mrf.mxu0
    %v137 = vadd.f32 0.0, %v136
    %v138 = vpop.f32.mrf.mxu0
    %v139 = vpop.f32.mrf.mxu0
    %v140 = vadd.f32 0.0, %v139
    %v141 = vpop.f32.mrf.mxu0
    %142 = vdwg.mxu0
    %v143 = vld [vmem:[%s4] sm:$0xf]
    %v144 = vld [vmem:[%s4 + $0x4] sm:$0xf]
    %v145 = vld [vmem:[%s4 + $0x8] sm:$0xf]
    %v146 = vld [vmem:[%s4 + $0xc] sm:$0xf]
    %v147 = vld [vmem:[%s4 + $0x10] sm:$0xf]
    %v148 = vld [vmem:[%s4 + $0x14] sm:$0xf]
    %v149 = vld [vmem:[%s4 + $0x18] sm:$0xf]
    %v150 = vld [vmem:[%s4 + $0x1c] sm:$0xf]
    %v159 = vunpack.c.l.b16 %v143
    %v160 = vunpack.c.l.b16 %v144
    %v161 = vunpack.c.l.b16 %v145
    %v162 = vunpack.c.l.b16 %v146
    %v163 = vunpack.c.l.b16 %v147
    %v164 = vunpack.c.l.b16 %v148
    %v165 = vunpack.c.l.b16 %v149
    %v166 = vunpack.c.l.b16 %v150
    %v167 = vpack.c.b16 %v160, %v159
    %v168 = vpack.c.b16 %v162, %v161
    %v169 = vpack.c.b16 %v164, %v163
    %v170 = vpack.c.b16 %v166, %v165
    %175 = vmatprep.subr.bf16.mxu0 0
    %176 = vmatpush1.bf16.msra.mxu0 0
    %177 = vmatprep.subr.bf16.mxu0 0
    %178 = vmatpush1.bf16.msra.mxu0 0
    %179 = vmatprep.subr.bf16.mxu0 0
    %180 = vmatpush1.bf16.msra.mxu0 0
    %181 = vmatprep.subr.bf16.mxu0 0
    %182 = vmatpush1.bf16.msra.mxu0 0
    %183 = vmatprep.subr.bf16.mxu0 0
    %184 = vmatpush1.bf16.msra.mxu0 %v170
    %185 = vmatprep.subr.bf16.mxu0 0
    %186 = vmatpush1.bf16.msra.mxu0 %v169
    %187 = vmatprep.subr.bf16.mxu0 0
    %188 = vmatpush1.bf16.msra.mxu0 %v168
    %189 = vmatprep.subr.bf16.mxu0 0
    %190 = vmatpush1.bf16.msra.mxu0 %v167
    %191 = vmatprep.subr.bf16.mxu0 0
    %192 = vmatpush2.bf16.msra.mxu0 0
    %193 = vmatprep.subr.bf16.mxu0 0
    %194 = vmatpush2.bf16.msra.mxu0 0
    %195 = vmatprep.subr.bf16.mxu0 0
    %196 = vmatpush2.bf16.msra.mxu0 0
    %197 = vmatprep.subr.bf16.mxu0 0
    %198 = vmatpush2.bf16.msra.mxu0 0
    %199 = vmatprep.subr.bf16.mxu0 0
    %200 = vmatpush2.bf16.msra.mxu0 0
    %201 = vmatprep.subr.bf16.mxu0 0
    %202 = vmatpush2.bf16.msra.mxu0 0
    %203 = vmatprep.subr.bf16.mxu0 0
    %204 = vmatpush2.bf16.msra.mxu0 0
    %205 = vmatprep.subr.bf16.mxu0 0
    %206 = vmatpush2.bf16.msra.mxu0 0
    %207 = vmatprep.mubr.bf16.mxu0 0
    %208 = vmatmul.mubr.bf16.gmra.mxu0 %v100
    %v209 = vpop.f32.mrf.mxu0
    %v210 = vadd.f32 0.0, %v209
    %v211 = vpop.f32.mrf.mxu0
    %v212 = vpop.f32.mrf.mxu0
    %v213 = vadd.f32 0.0, %v212
    %v214 = vpop.f32.mrf.mxu0
    %215 = vdwg.mxu0
    %v216 = vld [vmem:[%s8] sm:$0xff]
    %v217 = vmul.f32 %v137, %v216
    %v218 = vmul.f32 %v140, %v216
    %v219 = vld [vmem:[%s9] sm:$0xff]
    %v220 = vmul.f32 %v210, %v219
    %v221 = vmul.f32 %v213, %v219
    %v222 = vadd.f32 %v217, %v220
    %v223 = vadd.f32 %v218, %v221
    %v224 = vpack.c.bf16 %v222, %v222
    %v225 = vpack.c.bf16 %v223, %v223
    %227 = vrot.lane.b32.xlu0 %v224, 64
    %v228 = vpop.permute.xlu0 %227
    %vm229 = vcmask 130048
    %v231 = vsel %vm229, %v224, 0
    %v234 = vsel %vm229, %v228, 0
    %236 = vmatprep.subr.bf16.mxu0 0
    %237 = vmatpush1.bf16.xpose.msra.mxu0 0
    %238 = vmatprep.subr.bf16.mxu0 0
    %239 = vmatpush1.bf16.xpose.msra.mxu0 0
    %240 = vmatprep.subr.bf16.mxu0 0
    %241 = vmatpush1.bf16.xpose.msra.mxu0 0
    %242 = vmatprep.subr.bf16.mxu0 0
    %243 = vmatpush1.bf16.xpose.msra.mxu0 0
    %244 = vmatprep.subr.bf16.mxu0 0
    %245 = vmatpush1.bf16.xpose.msra.mxu0 0
    %246 = vmatprep.subr.bf16.mxu0 0
    %247 = vmatpush1.bf16.xpose.msra.mxu0 0
    %248 = vmatprep.subr.bf16.mxu0 0
    %249 = vmatpush1.bf16.xpose.msra.mxu0 0
    %250 = vmatprep.subr.bf16.mxu0 0
    %251 = vmatpush1.bf16.xpose.msra.mxu0 %v234
    %252 = vmatprep.subr.bf16.mxu0 0
    %253 = vmatpush2.bf16.xpose.msra.mxu0 0
    %254 = vmatprep.subr.bf16.mxu0 0
    %255 = vmatpush2.bf16.xpose.msra.mxu0 0
    %256 = vmatprep.subr.bf16.mxu0 0
    %257 = vmatpush2.bf16.xpose.msra.mxu0 0
    %258 = vmatprep.subr.bf16.mxu0 0
    %259 = vmatpush2.bf16.xpose.msra.mxu0 0
    %260 = vmatprep.subr.bf16.mxu0 0
    %261 = vmatpush2.bf16.xpose.msra.mxu0 0
    %262 = vmatprep.subr.bf16.mxu0 0
    %263 = vmatpush2.bf16.xpose.msra.mxu0 0
    %264 = vmatprep.subr.bf16.mxu0 0
    %265 = vmatpush2.bf16.xpose.msra.mxu0 0
    %266 = vmatprep.subr.bf16.mxu0 0
    %267 = vmatpush2.bf16.xpose.msra.mxu0 0
    %268 = vmatprep.mubr.bf16.mxu0 0
    %269 = vmatmul.mubr.bf16.gmra.mxu0 %v231
    %v270 = vpop.f32.mrf.mxu0
    %v271 = vadd.f32 0.0, %v270
    %v272 = vpop.f32.mrf.mxu0
    %v273 = vpop.f32.mrf.mxu0
    %v274 = vpop.f32.mrf.mxu0
    %275 = vdwg.mxu0
    %277 = vrot.lane.b32.xlu0 %v225, 64
    %v278 = vpop.permute.xlu0 %277
    %v280 = vsel %vm229, %v225, 0
    %v283 = vsel %vm229, %v278, 0
    %285 = vmatprep.subr.bf16.mxu0 0
    %286 = vmatpush1.bf16.xpose.msra.mxu0 0
    %287 = vmatprep.subr.bf16.mxu0 0
    %288 = vmatpush1.bf16.xpose.msra.mxu0 0
    %289 = vmatprep.subr.bf16.mxu0 0
    %290 = vmatpush1.bf16.xpose.msra.mxu0 0
    %291 = vmatprep.subr.bf16.mxu0 0
    %292 = vmatpush1.bf16.xpose.msra.mxu0 0
    %293 = vmatprep.subr.bf16.mxu0 0
    %294 = vmatpush1.bf16.xpose.msra.mxu0 0
    %295 = vmatprep.subr.bf16.mxu0 0
    %296 = vmatpush1.bf16.xpose.msra.mxu0 0
    %297 = vmatprep.subr.bf16.mxu0 0
    %298 = vmatpush1.bf16.xpose.msra.mxu0 0
    %299 = vmatprep.subr.bf16.mxu0 0
    %300 = vmatpush1.bf16.xpose.msra.mxu0 %v283
    %301 = vmatprep.subr.bf16.mxu0 0
    %302 = vmatpush2.bf16.xpose.msra.mxu0 0
    %303 = vmatprep.subr.bf16.mxu0 0
    %304 = vmatpush2.bf16.xpose.msra.mxu0 0
    %305 = vmatprep.subr.bf16.mxu0 0
    %306 = vmatpush2.bf16.xpose.msra.mxu0 0
    %307 = vmatprep.subr.bf16.mxu0 0
    %308 = vmatpush2.bf16.xpose.msra.mxu0 0
    %309 = vmatprep.subr.bf16.mxu0 0
    %310 = vmatpush2.bf16.xpose.msra.mxu0 0
    %311 = vmatprep.subr.bf16.mxu0 0
    %312 = vmatpush2.bf16.xpose.msra.mxu0 0
    %313 = vmatprep.subr.bf16.mxu0 0
    %314 = vmatpush2.bf16.xpose.msra.mxu0 0
    %315 = vmatprep.subr.bf16.mxu0 0
    %316 = vmatpush2.bf16.xpose.msra.mxu0 0
    %317 = vmatprep.mubr.bf16.mxu0 0
    %318 = vmatmul.mubr.bf16.gmra.mxu0 %v280
    %v319 = vpop.f32.mrf.mxu0
    %v320 = vadd.f32 0.0, %v319
    %v321 = vpop.f32.mrf.mxu0
    %v322 = vpop.f32.mrf.mxu0
    %v323 = vpop.f32.mrf.mxu0
    %324 = vdwg.mxu0
    %vm325 = vcmask 64512
    %v326 = vsel %vm325, %v271, -inf
    %327 = vmax.xlane.f32.xlu0 %v326
    %v328 = vpop.xlane.xlu0 %327
    %v329 = vsel %vm325, %v320, -inf
    %330 = vmax.xlane.f32.xlu0 %v329
    %v331 = vpop.xlane.xlu0 %330
    %v332 = vsub.f32 %v271, %v328
    %v333 = vsub.f32 %v320, %v331
    %v334 = vmul.f32 %v332, 1.442695
    %v335 = vpow.pop %v334
    %v336 = vmul.f32 %v333, 1.442695
    %v337 = vpow.pop %v336
    %v338 = vsel %vm325, %v335, 0.0
    %339 = vadd.xlane.f32.xlu0 %v338
    %v340 = vpop.xlane.xlu0 %339
    %v341 = vsel %vm325, %v337, 0.0
    %342 = vadd.xlane.f32.xlu0 %v341
    %v343 = vpop.xlane.xlu0 %342
    %v344 = vrcp.pop %v340
    %v345 = vrcp.pop %v343
    %v346 = vmul.f32 %v335, %v344
    %v347 = vmul.f32 %v337, %v345
    %v348 = vpack.c.bf16 %v346, %v346
    %v349 = vpack.c.bf16 %v347, %v347
    %350 = vrot.lane.b32.xlu0 %v224, 32
    %v351 = vpop.permute.xlu0 %350
    %v353 = vsel %vm325, %v348, 0
    %vm355 = vcmask 1043456
    %v357 = vsel %vm355, %v351, 0
    %359 = vmatprep.subr.bf16.mxu0 0
    %360 = vmatpush1.bf16.msra.mxu0 0
    %361 = vmatprep.subr.bf16.mxu0 0
    %362 = vmatpush1.bf16.msra.mxu0 0
    %363 = vmatprep.subr.bf16.mxu0 0
    %364 = vmatpush1.bf16.msra.mxu0 0
    %365 = vmatprep.subr.bf16.mxu0 0
    %366 = vmatpush1.bf16.msra.mxu0 0
    %367 = vmatprep.subr.bf16.mxu0 0
    %368 = vmatpush1.bf16.msra.mxu0 0
    %369 = vmatprep.subr.bf16.mxu0 0
    %370 = vmatpush1.bf16.msra.mxu0 0
    %371 = vmatprep.subr.bf16.mxu0 0
    %372 = vmatpush1.bf16.msra.mxu0 0
    %373 = vmatprep.subr.bf16.mxu0 0
    %374 = vmatpush1.bf16.msra.mxu0 %v357
    %375 = vmatprep.subr.bf16.mxu0 0
    %376 = vmatpush2.bf16.msra.mxu0 0
    %377 = vmatprep.subr.bf16.mxu0 0
    %378 = vmatpush2.bf16.msra.mxu0 0
    %379 = vmatprep.subr.bf16.mxu0 0
    %380 = vmatpush2.bf16.msra.mxu0 0
    %381 = vmatprep.subr.bf16.mxu0 0
    %382 = vmatpush2.bf16.msra.mxu0 0
    %383 = vmatprep.subr.bf16.mxu0 0
    %384 = vmatpush2.bf16.msra.mxu0 0
    %385 = vmatprep.subr.bf16.mxu0 0
    %386 = vmatpush2.bf16.msra.mxu0 0
    %387 = vmatprep.subr.bf16.mxu0 0
    %388 = vmatpush2.bf16.msra.mxu0 0
    %389 = vmatprep.subr.bf16.mxu0 0
    %390 = vmatpush2.bf16.msra.mxu0 0
    %391 = vmatprep.mubr.bf16.mxu0 0
    %392 = vmatmul.mubr.bf16.gmra.mxu0 %v353
    %v393 = vpop.f32.mrf.mxu0
    %v394 = vadd.f32 0.0, %v393
    %v395 = vpop.f32.mrf.mxu0
    %v396 = vpop.f32.mrf.mxu0
    %v397 = vpop.f32.mrf.mxu0
    %398 = vdwg.mxu0
    %399 = vrot.lane.b32.xlu0 %v225, 32
    %v400 = vpop.permute.xlu0 %399
    %v402 = vsel %vm325, %v349, 0
    %v405 = vsel %vm355, %v400, 0
    %407 = vmatprep.subr.bf16.mxu0 0
    %408 = vmatpush1.bf16.msra.mxu0 0
    %409 = vmatprep.subr.bf16.mxu0 0
    %410 = vmatpush1.bf16.msra.mxu0 0
    %411 = vmatprep.subr.bf16.mxu0 0
    %412 = vmatpush1.bf16.msra.mxu0 0
    %413 = vmatprep.subr.bf16.mxu0 0
    %414 = vmatpush1.bf16.msra.mxu0 0
    %415 = vmatprep.subr.bf16.mxu0 0
    %416 = vmatpush1.bf16.msra.mxu0 0
    %417 = vmatprep.subr.bf16.mxu0 0
    %418 = vmatpush1.bf16.msra.mxu0 0
    %419 = vmatprep.subr.bf16.mxu0 0
    %420 = vmatpush1.bf16.msra.mxu0 0
    %421 = vmatprep.subr.bf16.mxu0 0
    %422 = vmatpush1.bf16.msra.mxu0 %v405
    %423 = vmatprep.subr.bf16.mxu0 0
    %424 = vmatpush2.bf16.msra.mxu0 0
    %425 = vmatprep.subr.bf16.mxu0 0
    %426 = vmatpush2.bf16.msra.mxu0 0
    %427 = vmatprep.subr.bf16.mxu0 0
    %428 = vmatpush2.bf16.msra.mxu0 0
    %429 = vmatprep.subr.bf16.mxu0 0
    %430 = vmatpush2.bf16.msra.mxu0 0
    %431 = vmatprep.subr.bf16.mxu0 0
    %432 = vmatpush2.bf16.msra.mxu0 0
    %433 = vmatprep.subr.bf16.mxu0 0
    %434 = vmatpush2.bf16.msra.mxu0 0
    %435 = vmatprep.subr.bf16.mxu0 0
    %436 = vmatpush2.bf16.msra.mxu0 0
    %437 = vmatprep.subr.bf16.mxu0 0
    %438 = vmatpush2.bf16.msra.mxu0 0
    %439 = vmatprep.mubr.bf16.mxu0 0
    %440 = vmatmul.mubr.bf16.gmra.mxu0 %v402
    %v441 = vpop.f32.mrf.mxu0
    %v442 = vadd.f32 0.0, %v441
    %v443 = vpop.f32.mrf.mxu0
    %v444 = vpop.f32.mrf.mxu0
    %v445 = vpop.f32.mrf.mxu0
    %446 = vdwg.mxu0
    %447 = vst.msk [vmem:[#allocation2] sm:$0xff] %vm229, %v394
    %448 = vst.msk [vmem:[#allocation2 + $0x8] sm:$0xff] %vm229, %v442
    %449 = vrot.lane.b32.xlu0 %v224, 112
    %v450 = vpop.permute.xlu0 %449
    %v452 = vsel %vm229, %v450, 0
    %454 = vmatprep.subr.bf16.mxu0 0
    %455 = vmatpush1.bf16.xpose.msra.mxu0 0
    %456 = vmatprep.subr.bf16.mxu0 0
    %457 = vmatpush1.bf16.xpose.msra.mxu0 0
    %458 = vmatprep.subr.bf16.mxu0 0
    %459 = vmatpush1.bf16.xpose.msra.mxu0 0
    %460 = vmatprep.subr.bf16.mxu0 0
    %461 = vmatpush1.bf16.xpose.msra.mxu0 0
    %462 = vmatprep.subr.bf16.mxu0 0
    %463 = vmatpush1.bf16.xpose.msra.mxu0 0
    %464 = vmatprep.subr.bf16.mxu0 0
    %465 = vmatpush1.bf16.xpose.msra.mxu0 0
    %466 = vmatprep.subr.bf16.mxu0 0
    %467 = vmatpush1.bf16.xpose.msra.mxu0 0
    %468 = vmatprep.subr.bf16.mxu0 0
    %469 = vmatpush1.bf16.xpose.msra.mxu0 %v234
    %470 = vmatprep.subr.bf16.mxu0 0
    %471 = vmatpush2.bf16.xpose.msra.mxu0 0
    %472 = vmatprep.subr.bf16.mxu0 0
    %473 = vmatpush2.bf16.xpose.msra.mxu0 0
    %474 = vmatprep.subr.bf16.mxu0 0
    %475 = vmatpush2.bf16.xpose.msra.mxu0 0
    %476 = vmatprep.subr.bf16.mxu0 0
    %477 = vmatpush2.bf16.xpose.msra.mxu0 0
    %478 = vmatprep.subr.bf16.mxu0 0
    %479 = vmatpush2.bf16.xpose.msra.mxu0 0
    %480 = vmatprep.subr.bf16.mxu0 0
    %481 = vmatpush2.bf16.xpose.msra.mxu0 0
    %482 = vmatprep.subr.bf16.mxu0 0
    %483 = vmatpush2.bf16.xpose.msra.mxu0 0
    %484 = vmatprep.subr.bf16.mxu0 0
    %485 = vmatpush2.bf16.xpose.msra.mxu0 0
    %486 = vmatprep.mubr.bf16.mxu0 0
    %487 = vmatmul.mubr.bf16.gmra.mxu0 %v452
    %v488 = vpop.f32.mrf.mxu0
    %v489 = vadd.f32 0.0, %v488
    %v490 = vpop.f32.mrf.mxu0
    %v491 = vpop.f32.mrf.mxu0
    %v492 = vpop.f32.mrf.mxu0
    %493 = vdwg.mxu0
    %494 = vrot.lane.b32.xlu0 %v225, 112
    %v495 = vpop.permute.xlu0 %494
    %v497 = vsel %vm229, %v495, 0
    %499 = vmatprep.subr.bf16.mxu0 0
    %500 = vmatpush1.bf16.xpose.msra.mxu0 0
    %501 = vmatprep.subr.bf16.mxu0 0
    %502 = vmatpush1.bf16.xpose.msra.mxu0 0
    %503 = vmatprep.subr.bf16.mxu0 0
    %504 = vmatpush1.bf16.xpose.msra.mxu0 0
    %505 = vmatprep.subr.bf16.mxu0 0
    %506 = vmatpush1.bf16.xpose.msra.mxu0 0
    %507 = vmatprep.subr.bf16.mxu0 0
    %508 = vmatpush1.bf16.xpose.msra.mxu0 0
    %509 = vmatprep.subr.bf16.mxu0 0
    %510 = vmatpush1.bf16.xpose.msra.mxu0 0
    %511 = vmatprep.subr.bf16.mxu0 0
    %512 = vmatpush1.bf16.xpose.msra.mxu0 0
    %513 = vmatprep.subr.bf16.mxu0 0
    %514 = vmatpush1.bf16.xpose.msra.mxu0 %v283
    %515 = vmatprep.subr.bf16.mxu0 0
    %516 = vmatpush2.bf16.xpose.msra.mxu0 0
    %517 = vmatprep.subr.bf16.mxu0 0
    %518 = vmatpush2.bf16.xpose.msra.mxu0 0
    %519 = vmatprep.subr.bf16.mxu0 0
    %520 = vmatpush2.bf16.xpose.msra.mxu0 0
    %521 = vmatprep.subr.bf16.mxu0 0
    %522 = vmatpush2.bf16.xpose.msra.mxu0 0
    %523 = vmatprep.subr.bf16.mxu0 0
    %524 = vmatpush2.bf16.xpose.msra.mxu0 0
    %525 = vmatprep.subr.bf16.mxu0 0
    %526 = vmatpush2.bf16.xpose.msra.mxu0 0
    %527 = vmatprep.subr.bf16.mxu0 0
    %528 = vmatpush2.bf16.xpose.msra.mxu0 0
    %529 = vmatprep.subr.bf16.mxu0 0
    %530 = vmatpush2.bf16.xpose.msra.mxu0 0
    %531 = vmatprep.mubr.bf16.mxu0 0
    %532 = vmatmul.mubr.bf16.gmra.mxu0 %v497
    %v533 = vpop.f32.mrf.mxu0
    %v534 = vadd.f32 0.0, %v533
    %v535 = vpop.f32.mrf.mxu0
    %v536 = vpop.f32.mrf.mxu0
    %v537 = vpop.f32.mrf.mxu0
    %538 = vdwg.mxu0
    %v539 = vsel %vm325, %v489, -inf
    %540 = vmax.xlane.f32.xlu0 %v539
    %v541 = vpop.xlane.xlu0 %540
    %v542 = vsel %vm325, %v534, -inf
    %543 = vmax.xlane.f32.xlu0 %v542
    %v544 = vpop.xlane.xlu0 %543
    %v545 = vsub.f32 %v489, %v541
    %v546 = vsub.f32 %v534, %v544
    %v547 = vmul.f32 %v545, 1.442695
    %v548 = vpow.pop %v547
    %v549 = vmul.f32 %v546, 1.442695
    %v550 = vpow.pop %v549
    %v551 = vsel %vm325, %v548, 0.0
    %552 = vadd.xlane.f32.xlu0 %v551
    %v553 = vpop.xlane.xlu0 %552
    %v554 = vsel %vm325, %v550, 0.0
    %555 = vadd.xlane.f32.xlu0 %v554
    %v556 = vpop.xlane.xlu0 %555
    %v557 = vrcp.pop %v553
    %v558 = vrcp.pop %v556
    %v559 = vmul.f32 %v548, %v557
    %v560 = vmul.f32 %v550, %v558
    %v561 = vpack.c.bf16 %v559, %v559
    %v562 = vpack.c.bf16 %v560, %v560
    %v564 = vsel %vm325, %v561, 0
    %566 = vmatprep.subr.bf16.mxu0 0
    %567 = vmatpush1.bf16.msra.mxu0 0
    %568 = vmatprep.subr.bf16.mxu0 0
    %569 = vmatpush1.bf16.msra.mxu0 0
    %570 = vmatprep.subr.bf16.mxu0 0
    %571 = vmatpush1.bf16.msra.mxu0 0
    %572 = vmatprep.subr.bf16.mxu0 0
    %573 = vmatpush1.bf16.msra.mxu0 0
    %574 = vmatprep.subr.bf16.mxu0 0
    %575 = vmatpush1.bf16.msra.mxu0 0
    %576 = vmatprep.subr.bf16.mxu0 0
    %577 = vmatpush1.bf16.msra.mxu0 0
    %578 = vmatprep.subr.bf16.mxu0 0
    %579 = vmatpush1.bf16.msra.mxu0 0
    %580 = vmatprep.subr.bf16.mxu0 0
    %581 = vmatpush1.bf16.msra.mxu0 %v357
    %582 = vmatprep.subr.bf16.mxu0 0
    %583 = vmatpush2.bf16.msra.mxu0 0
    %584 = vmatprep.subr.bf16.mxu0 0
    %585 = vmatpush2.bf16.msra.mxu0 0
    %586 = vmatprep.subr.bf16.mxu0 0
    %587 = vmatpush2.bf16.msra.mxu0 0
    %588 = vmatprep.subr.bf16.mxu0 0
    %589 = vmatpush2.bf16.msra.mxu0 0
    %590 = vmatprep.subr.bf16.mxu0 0
    %591 = vmatpush2.bf16.msra.mxu0 0
    %592 = vmatprep.subr.bf16.mxu0 0
    %593 = vmatpush2.bf16.msra.mxu0 0
    %594 = vmatprep.subr.bf16.mxu0 0
    %595 = vmatpush2.bf16.msra.mxu0 0
    %596 = vmatprep.subr.bf16.mxu0 0
    %597 = vmatpush2.bf16.msra.mxu0 0
    %598 = vmatprep.mubr.bf16.mxu0 0
    %599 = vmatmul.mubr.bf16.gmra.mxu0 %v564
    %v600 = vpop.f32.mrf.mxu0
    %v601 = vadd.f32 0.0, %v600
    %v602 = vpop.f32.mrf.mxu0
    %v603 = vpop.f32.mrf.mxu0
    %v604 = vpop.f32.mrf.mxu0
    %605 = vdwg.mxu0
    %v607 = vsel %vm325, %v562, 0
    %609 = vmatprep.subr.bf16.mxu0 0
    %610 = vmatpush1.bf16.msra.mxu0 0
    %611 = vmatprep.subr.bf16.mxu0 0
    %612 = vmatpush1.bf16.msra.mxu0 0
    %613 = vmatprep.subr.bf16.mxu0 0
    %614 = vmatpush1.bf16.msra.mxu0 0
    %615 = vmatprep.subr.bf16.mxu0 0
    %616 = vmatpush1.bf16.msra.mxu0 0
    %617 = vmatprep.subr.bf16.mxu0 0
    %618 = vmatpush1.bf16.msra.mxu0 0
    %619 = vmatprep.subr.bf16.mxu0 0
    %620 = vmatpush1.bf16.msra.mxu0 0
    %621 = vmatprep.subr.bf16.mxu0 0
    %622 = vmatpush1.bf16.msra.mxu0 0
    %623 = vmatprep.subr.bf16.mxu0 0
    %624 = vmatpush1.bf16.msra.mxu0 %v405
    %625 = vmatprep.subr.bf16.mxu0 0
    %626 = vmatpush2.bf16.msra.mxu0 0
    %627 = vmatprep.subr.bf16.mxu0 0
    %628 = vmatpush2.bf16.msra.mxu0 0
    %629 = vmatprep.subr.bf16.mxu0 0
    %630 = vmatpush2.bf16.msra.mxu0 0
    %631 = vmatprep.subr.bf16.mxu0 0
    %632 = vmatpush2.bf16.msra.mxu0 0
    %633 = vmatprep.subr.bf16.mxu0 0
    %634 = vmatpush2.bf16.msra.mxu0 0
    %635 = vmatprep.subr.bf16.mxu0 0
    %636 = vmatpush2.bf16.msra.mxu0 0
    %637 = vmatprep.subr.bf16.mxu0 0
    %638 = vmatpush2.bf16.msra.mxu0 0
    %639 = vmatprep.subr.bf16.mxu0 0
    %640 = vmatpush2.bf16.msra.mxu0 0
    %641 = vmatprep.mubr.bf16.mxu0 0
    %642 = vmatmul.mubr.bf16.gmra.mxu0 %v607
    %v643 = vpop.f32.mrf.mxu0
    %v644 = vadd.f32 0.0, %v643
    %v645 = vpop.f32.mrf.mxu0
    %v646 = vpop.f32.mrf.mxu0
    %v647 = vpop.f32.mrf.mxu0
    %648 = vdwg.mxu0
    %651 = vrot.lane.b32.xlu0 %v601, 16
    %v652 = vpop.permute.xlu0 %651
    %653 = vrot.lane.b32.xlu0 %v644, 16
    %v654 = vpop.permute.xlu0 %653
    %vm657 = vcmask 261248
    %658 = vst.msk [vmem:[#allocation2] sm:$0xff] %vm657, %v652
    %659 = vst.msk [vmem:[#allocation2 + $0x8] sm:$0xff] %vm657, %v654
    %660 = vrot.lane.b32.xlu0 %v224, 96
    %v661 = vpop.permute.xlu0 %660
    %662 = vrot.lane.b32.xlu0 %v224, 48
    %v663 = vpop.permute.xlu0 %662
    %v665 = vsel %vm229, %v661, 0
    %v668 = vsel %vm229, %v663, 0
    %670 = vmatprep.subr.bf16.mxu0 0
    %671 = vmatpush1.bf16.xpose.msra.mxu0 0
    %672 = vmatprep.subr.bf16.mxu0 0
    %673 = vmatpush1.bf16.xpose.msra.mxu0 0
    %674 = vmatprep.subr.bf16.mxu0 0
    %675 = vmatpush1.bf16.xpose.msra.mxu0 0
    %676 = vmatprep.subr.bf16.mxu0 0
    %677 = vmatpush1.bf16.xpose.msra.mxu0 0
    %678 = vmatprep.subr.bf16.mxu0 0
    %679 = vmatpush1.bf16.xpose.msra.mxu0 0
    %680 = vmatprep.subr.bf16.mxu0 0
    %681 = vmatpush1.bf16.xpose.msra.mxu0 0
    %682 = vmatprep.subr.bf16.mxu0 0
    %683 = vmatpush1.bf16.xpose.msra.mxu0 0
    %684 = vmatprep.subr.bf16.mxu0 0
    %685 = vmatpush1.bf16.xpose.msra.mxu0 %v668
    %686 = vmatprep.subr.bf16.mxu0 0
    %687 = vmatpush2.bf16.xpose.msra.mxu0 0
    %688 = vmatprep.subr.bf16.mxu0 0
    %689 = vmatpush2.bf16.xpose.msra.mxu0 0
    %690 = vmatprep.subr.bf16.mxu0 0
    %691 = vmatpush2.bf16.xpose.msra.mxu0 0
    %692 = vmatprep.subr.bf16.mxu0 0
    %693 = vmatpush2.bf16.xpose.msra.mxu0 0
    %694 = vmatprep.subr.bf16.mxu0 0
    %695 = vmatpush2.bf16.xpose.msra.mxu0 0
    %696 = vmatprep.subr.bf16.mxu0 0
    %697 = vmatpush2.bf16.xpose.msra.mxu0 0
    %698 = vmatprep.subr.bf16.mxu0 0
    %699 = vmatpush2.bf16.xpose.msra.mxu0 0
    %700 = vmatprep.subr.bf16.mxu0 0
    %701 = vmatpush2.bf16.xpose.msra.mxu0 0
    %702 = vmatprep.mubr.bf16.mxu0 0
    %703 = vmatmul.mubr.bf16.gmra.mxu0 %v665
    %v704 = vpop.f32.mrf.mxu0
    %v705 = vadd.f32 0.0, %v704
    %v706 = vpop.f32.mrf.mxu0
    %v707 = vpop.f32.mrf.mxu0
    %v708 = vpop.f32.mrf.mxu0
    %709 = vdwg.mxu0
    %710 = vrot.lane.b32.xlu0 %v225, 96
    %v711 = vpop.permute.xlu0 %710
    %712 = vrot.lane.b32.xlu0 %v225, 48
    %v713 = vpop.permute.xlu0 %712
    %v715 = vsel %vm229, %v711, 0
    %v718 = vsel %vm229, %v713, 0
    %720 = vmatprep.subr.bf16.mxu0 0
    %721 = vmatpush1.bf16.xpose.msra.mxu0 0
    %722 = vmatprep.subr.bf16.mxu0 0
    %723 = vmatpush1.bf16.xpose.msra.mxu0 0
    %724 = vmatprep.subr.bf16.mxu0 0
    %725 = vmatpush1.bf16.xpose.msra.mxu0 0
    %726 = vmatprep.subr.bf16.mxu0 0
    %727 = vmatpush1.bf16.xpose.msra.mxu0 0
    %728 = vmatprep.subr.bf16.mxu0 0
    %729 = vmatpush1.bf16.xpose.msra.mxu0 0
    %730 = vmatprep.subr.bf16.mxu0 0
    %731 = vmatpush1.bf16.xpose.msra.mxu0 0
    %732 = vmatprep.subr.bf16.mxu0 0
    %733 = vmatpush1.bf16.xpose.msra.mxu0 0
    %734 = vmatprep.subr.bf16.mxu0 0
    %735 = vmatpush1.bf16.xpose.msra.mxu0 %v718
    %736 = vmatprep.subr.bf16.mxu0 0
    %737 = vmatpush2.bf16.xpose.msra.mxu0 0
    %738 = vmatprep.subr.bf16.mxu0 0
    %739 = vmatpush2.bf16.xpose.msra.mxu0 0
    %740 = vmatprep.subr.bf16.mxu0 0
    %741 = vmatpush2.bf16.xpose.msra.mxu0 0
    %742 = vmatprep.subr.bf16.mxu0 0
    %743 = vmatpush2.bf16.xpose.msra.mxu0 0
    %744 = vmatprep.subr.bf16.mxu0 0
    %745 = vmatpush2.bf16.xpose.msra.mxu0 0
    %746 = vmatprep.subr.bf16.mxu0 0
    %747 = vmatpush2.bf16.xpose.msra.mxu0 0
    %748 = vmatprep.subr.bf16.mxu0 0
    %749 = vmatpush2.bf16.xpose.msra.mxu0 0
    %750 = vmatprep.subr.bf16.mxu0 0
    %751 = vmatpush2.bf16.xpose.msra.mxu0 0
    %752 = vmatprep.mubr.bf16.mxu0 0
    %753 = vmatmul.mubr.bf16.gmra.mxu0 %v715
    %v754 = vpop.f32.mrf.mxu0
    %v755 = vadd.f32 0.0, %v754
    %v756 = vpop.f32.mrf.mxu0
    %v757 = vpop.f32.mrf.mxu0
    %v758 = vpop.f32.mrf.mxu0
    %759 = vdwg.mxu0
    %v760 = vsel %vm325, %v705, -inf
    %761 = vmax.xlane.f32.xlu0 %v760
    %v762 = vpop.xlane.xlu0 %761
    %v763 = vsel %vm325, %v755, -inf
    %764 = vmax.xlane.f32.xlu0 %v763
    %v765 = vpop.xlane.xlu0 %764
    %v766 = vsub.f32 %v705, %v762
    %v767 = vsub.f32 %v755, %v765
    %v768 = vmul.f32 %v766, 1.442695
    %v769 = vpow.pop %v768
    %v770 = vmul.f32 %v767, 1.442695
    %v771 = vpow.pop %v770
    %v772 = vsel %vm325, %v769, 0.0
    %773 = vadd.xlane.f32.xlu0 %v772
    %v774 = vpop.xlane.xlu0 %773
    %v775 = vsel %vm325, %v771, 0.0
    %776 = vadd.xlane.f32.xlu0 %v775
    %v777 = vpop.xlane.xlu0 %776
    %v778 = vrcp.pop %v774
    %v779 = vrcp.pop %v777
    %v780 = vmul.f32 %v769, %v778
    %v781 = vmul.f32 %v771, %v779
    %v782 = vpack.c.bf16 %v780, %v780
    %v783 = vpack.c.bf16 %v781, %v781
    %784 = vrot.lane.b32.xlu0 %v224, 16
    %v785 = vpop.permute.xlu0 %784
    %v787 = vsel %vm325, %v782, 0
    %v790 = vsel %vm355, %v785, 0
    %792 = vmatprep.subr.bf16.mxu0 0
    %793 = vmatpush1.bf16.msra.mxu0 0
    %794 = vmatprep.subr.bf16.mxu0 0
    %795 = vmatpush1.bf16.msra.mxu0 0
    %796 = vmatprep.subr.bf16.mxu0 0
    %797 = vmatpush1.bf16.msra.mxu0 0
    %798 = vmatprep.subr.bf16.mxu0 0
    %799 = vmatpush1.bf16.msra.mxu0 0
    %800 = vmatprep.subr.bf16.mxu0 0
    %801 = vmatpush1.bf16.msra.mxu0 0
    %802 = vmatprep.subr.bf16.mxu0 0
    %803 = vmatpush1.bf16.msra.mxu0 0
    %804 = vmatprep.subr.bf16.mxu0 0
    %805 = vmatpush1.bf16.msra.mxu0 0
    %806 = vmatprep.subr.bf16.mxu0 0
    %807 = vmatpush1.bf16.msra.mxu0 %v790
    %808 = vmatprep.subr.bf16.mxu0 0
    %809 = vmatpush2.bf16.msra.mxu0 0
    %810 = vmatprep.subr.bf16.mxu0 0
    %811 = vmatpush2.bf16.msra.mxu0 0
    %812 = vmatprep.subr.bf16.mxu0 0
    %813 = vmatpush2.bf16.msra.mxu0 0
    %814 = vmatprep.subr.bf16.mxu0 0
    %815 = vmatpush2.bf16.msra.mxu0 0
    %816 = vmatprep.subr.bf16.mxu0 0
    %817 = vmatpush2.bf16.msra.mxu0 0
    %818 = vmatprep.subr.bf16.mxu0 0
    %819 = vmatpush2.bf16.msra.mxu0 0
    %820 = vmatprep.subr.bf16.mxu0 0
    %821 = vmatpush2.bf16.msra.mxu0 0
    %822 = vmatprep.subr.bf16.mxu0 0
    %823 = vmatpush2.bf16.msra.mxu0 0
    %824 = vmatprep.mubr.bf16.mxu0 0
    %825 = vmatmul.mubr.bf16.gmra.mxu0 %v787
    %v826 = vpop.f32.mrf.mxu0
    %v827 = vadd.f32 0.0, %v826
    %v828 = vpop.f32.mrf.mxu0
    %v829 = vpop.f32.mrf.mxu0
    %v830 = vpop.f32.mrf.mxu0
    %831 = vdwg.mxu0
    %832 = vrot.lane.b32.xlu0 %v225, 16
    %v833 = vpop.permute.xlu0 %832
    %v835 = vsel %vm325, %v783, 0
    %v838 = vsel %vm355, %v833, 0
    %840 = vmatprep.subr.bf16.mxu0 0
    %841 = vmatpush1.bf16.msra.mxu0 0
    %842 = vmatprep.subr.bf16.mxu0 0
    %843 = vmatpush1.bf16.msra.mxu0 0
    %844 = vmatprep.subr.bf16.mxu0 0
    %845 = vmatpush1.bf16.msra.mxu0 0
    %846 = vmatprep.subr.bf16.mxu0 0
    %847 = vmatpush1.bf16.msra.mxu0 0
    %848 = vmatprep.subr.bf16.mxu0 0
    %849 = vmatpush1.bf16.msra.mxu0 0
    %850 = vmatprep.subr.bf16.mxu0 0
    %851 = vmatpush1.bf16.msra.mxu0 0
    %852 = vmatprep.subr.bf16.mxu0 0
    %853 = vmatpush1.bf16.msra.mxu0 0
    %854 = vmatprep.subr.bf16.mxu0 0
    %855 = vmatpush1.bf16.msra.mxu0 %v838
    %856 = vmatprep.subr.bf16.mxu0 0
    %857 = vmatpush2.bf16.msra.mxu0 0
    %858 = vmatprep.subr.bf16.mxu0 0
    %859 = vmatpush2.bf16.msra.mxu0 0
    %860 = vmatprep.subr.bf16.mxu0 0
    %861 = vmatpush2.bf16.msra.mxu0 0
    %862 = vmatprep.subr.bf16.mxu0 0
    %863 = vmatpush2.bf16.msra.mxu0 0
    %864 = vmatprep.subr.bf16.mxu0 0
    %865 = vmatpush2.bf16.msra.mxu0 0
    %866 = vmatprep.subr.bf16.mxu0 0
    %867 = vmatpush2.bf16.msra.mxu0 0
    %868 = vmatprep.subr.bf16.mxu0 0
    %869 = vmatpush2.bf16.msra.mxu0 0
    %870 = vmatprep.subr.bf16.mxu0 0
    %871 = vmatpush2.bf16.msra.mxu0 0
    %872 = vmatprep.mubr.bf16.mxu0 0
    %873 = vmatmul.mubr.bf16.gmra.mxu0 %v835
    %v874 = vpop.f32.mrf.mxu0
    %v875 = vadd.f32 0.0, %v874
    %v876 = vpop.f32.mrf.mxu0
    %v877 = vpop.f32.mrf.mxu0
    %v878 = vpop.f32.mrf.mxu0
    %879 = vdwg.mxu0
    %882 = vrot.lane.b32.xlu0 %v827, 32
    %v883 = vpop.permute.xlu0 %882
    %884 = vrot.lane.b32.xlu0 %v875, 32
    %v885 = vpop.permute.xlu0 %884
    %vm888 = vcmask 392448
    %889 = vst.msk [vmem:[#allocation2] sm:$0xff] %vm888, %v883
    %890 = vst.msk [vmem:[#allocation2 + $0x8] sm:$0xff] %vm888, %v885
    %891 = vrot.lane.b32.xlu0 %v224, 80
    %v892 = vpop.permute.xlu0 %891
    %v894 = vsel %vm229, %v892, 0
    %896 = vmatprep.subr.bf16.mxu0 0
    %897 = vmatpush1.bf16.xpose.msra.mxu0 0
    %898 = vmatprep.subr.bf16.mxu0 0
    %899 = vmatpush1.bf16.xpose.msra.mxu0 0
    %900 = vmatprep.subr.bf16.mxu0 0
    %901 = vmatpush1.bf16.xpose.msra.mxu0 0
    %902 = vmatprep.subr.bf16.mxu0 0
    %903 = vmatpush1.bf16.xpose.msra.mxu0 0
    %904 = vmatprep.subr.bf16.mxu0 0
    %905 = vmatpush1.bf16.xpose.msra.mxu0 0
    %906 = vmatprep.subr.bf16.mxu0 0
    %907 = vmatpush1.bf16.xpose.msra.mxu0 0
    %908 = vmatprep.subr.bf16.mxu0 0
    %909 = vmatpush1.bf16.xpose.msra.mxu0 0
    %910 = vmatprep.subr.bf16.mxu0 0
    %911 = vmatpush1.bf16.xpose.msra.mxu0 %v668
    %912 = vmatprep.subr.bf16.mxu0 0
    %913 = vmatpush2.bf16.xpose.msra.mxu0 0
    %914 = vmatprep.subr.bf16.mxu0 0
    %915 = vmatpush2.bf16.xpose.msra.mxu0 0
    %916 = vmatprep.subr.bf16.mxu0 0
    %917 = vmatpush2.bf16.xpose.msra.mxu0 0
    %918 = vmatprep.subr.bf16.mxu0 0
    %919 = vmatpush2.bf16.xpose.msra.mxu0 0
    %920 = vmatprep.subr.bf16.mxu0 0
    %921 = vmatpush2.bf16.xpose.msra.mxu0 0
    %922 = vmatprep.subr.bf16.mxu0 0
    %923 = vmatpush2.bf16.xpose.msra.mxu0 0
    %924 = vmatprep.subr.bf16.mxu0 0
    %925 = vmatpush2.bf16.xpose.msra.mxu0 0
    %926 = vmatprep.subr.bf16.mxu0 0
    %927 = vmatpush2.bf16.xpose.msra.mxu0 0
    %928 = vmatprep.mubr.bf16.mxu0 0
    %929 = vmatmul.mubr.bf16.gmra.mxu0 %v894
    %v930 = vpop.f32.mrf.mxu0
    %v931 = vadd.f32 0.0, %v930
    %v932 = vpop.f32.mrf.mxu0
    %v933 = vpop.f32.mrf.mxu0
    %v934 = vpop.f32.mrf.mxu0
    %935 = vdwg.mxu0
    %936 = vrot.lane.b32.xlu0 %v225, 80
    %v937 = vpop.permute.xlu0 %936
    %v939 = vsel %vm229, %v937, 0
    %941 = vmatprep.subr.bf16.mxu0 0
    %942 = vmatpush1.bf16.xpose.msra.mxu0 0
    %943 = vmatprep.subr.bf16.mxu0 0
    %944 = vmatpush1.bf16.xpose.msra.mxu0 0
    %945 = vmatprep.subr.bf16.mxu0 0
    %946 = vmatpush1.bf16.xpose.msra.mxu0 0
    %947 = vmatprep.subr.bf16.mxu0 0
    %948 = vmatpush1.bf16.xpose.msra.mxu0 0
    %949 = vmatprep.subr.bf16.mxu0 0
    %950 = vmatpush1.bf16.xpose.msra.mxu0 0
    %951 = vmatprep.subr.bf16.mxu0 0
    %952 = vmatpush1.bf16.xpose.msra.mxu0 0
    %953 = vmatprep.subr.bf16.mxu0 0
    %954 = vmatpush1.bf16.xpose.msra.mxu0 0
    %955 = vmatprep.subr.bf16.mxu0 0
    %956 = vmatpush1.bf16.xpose.msra.mxu0 %v718
    %957 = vmatprep.subr.bf16.mxu0 0
    %958 = vmatpush2.bf16.xpose.msra.mxu0 0
    %959 = vmatprep.subr.bf16.mxu0 0
    %960 = vmatpush2.bf16.xpose.msra.mxu0 0
    %961 = vmatprep.subr.bf16.mxu0 0
    %962 = vmatpush2.bf16.xpose.msra.mxu0 0
    %963 = vmatprep.subr.bf16.mxu0 0
    %964 = vmatpush2.bf16.xpose.msra.mxu0 0
    %965 = vmatprep.subr.bf16.mxu0 0
    %966 = vmatpush2.bf16.xpose.msra.mxu0 0
    %967 = vmatprep.subr.bf16.mxu0 0
    %968 = vmatpush2.bf16.xpose.msra.mxu0 0
    %969 = vmatprep.subr.bf16.mxu0 0
    %970 = vmatpush2.bf16.xpose.msra.mxu0 0
    %971 = vmatprep.subr.bf16.mxu0 0
    %972 = vmatpush2.bf16.xpose.msra.mxu0 0
    %973 = vmatprep.mubr.bf16.mxu0 0
    %974 = vmatmul.mubr.bf16.gmra.mxu0 %v939
    %v975 = vpop.f32.mrf.mxu0
    %v976 = vadd.f32 0.0, %v975
    %v977 = vpop.f32.mrf.mxu0
    %v978 = vpop.f32.mrf.mxu0
    %v979 = vpop.f32.mrf.mxu0
    %980 = vdwg.mxu0
    %v981 = vsel %vm325, %v931, -inf
    %982 = vmax.xlane.f32.xlu0 %v981
    %v983 = vpop.xlane.xlu0 %982
    %v984 = vsel %vm325, %v976, -inf
    %985 = vmax.xlane.f32.xlu0 %v984
    %v986 = vpop.xlane.xlu0 %985
    %v987 = vsub.f32 %v931, %v983
    %v988 = vsub.f32 %v976, %v986
    %v989 = vmul.f32 %v987, 1.442695
    %v990 = vpow.pop %v989
    %v991 = vmul.f32 %v988, 1.442695
    %v992 = vpow.pop %v991
    %v993 = vsel %vm325, %v990, 0.0
    %994 = vadd.xlane.f32.xlu0 %v993
    %v995 = vpop.xlane.xlu0 %994
    %v996 = vsel %vm325, %v992, 0.0
    %997 = vadd.xlane.f32.xlu0 %v996
    %v998 = vpop.xlane.xlu0 %997
    %v999 = vrcp.pop %v995
    %v1000 = vrcp.pop %v998
    %v1001 = vmul.f32 %v990, %v999
    %v1002 = vmul.f32 %v992, %v1000
    %v1003 = vpack.c.bf16 %v1001, %v1001
    %v1004 = vpack.c.bf16 %v1002, %v1002
    %v1006 = vsel %vm325, %v1003, 0
    %1008 = vmatprep.subr.bf16.mxu0 0
    %1009 = vmatpush1.bf16.msra.mxu0 0
    %1010 = vmatprep.subr.bf16.mxu0 0
    %1011 = vmatpush1.bf16.msra.mxu0 0
    %1012 = vmatprep.subr.bf16.mxu0 0
    %1013 = vmatpush1.bf16.msra.mxu0 0
    %1014 = vmatprep.subr.bf16.mxu0 0
    %1015 = vmatpush1.bf16.msra.mxu0 0
    %1016 = vmatprep.subr.bf16.mxu0 0
    %1017 = vmatpush1.bf16.msra.mxu0 0
    %1018 = vmatprep.subr.bf16.mxu0 0
    %1019 = vmatpush1.bf16.msra.mxu0 0
    %1020 = vmatprep.subr.bf16.mxu0 0
    %1021 = vmatpush1.bf16.msra.mxu0 0
    %1022 = vmatprep.subr.bf16.mxu0 0
    %1023 = vmatpush1.bf16.msra.mxu0 %v790
    %1024 = vmatprep.subr.bf16.mxu0 0
    %1025 = vmatpush2.bf16.msra.mxu0 0
    %1026 = vmatprep.subr.bf16.mxu0 0
    %1027 = vmatpush2.bf16.msra.mxu0 0
    %1028 = vmatprep.subr.bf16.mxu0 0
    %1029 = vmatpush2.bf16.msra.mxu0 0
    %1030 = vmatprep.subr.bf16.mxu0 0
    %1031 = vmatpush2.bf16.msra.mxu0 0
    %1032 = vmatprep.subr.bf16.mxu0 0
    %1033 = vmatpush2.bf16.msra.mxu0 0
    %1034 = vmatprep.subr.bf16.mxu0 0
    %1035 = vmatpush2.bf16.msra.mxu0 0
    %1036 = vmatprep.subr.bf16.mxu0 0
    %1037 = vmatpush2.bf16.msra.mxu0 0
    %1038 = vmatprep.subr.bf16.mxu0 0
    %1039 = vmatpush2.bf16.msra.mxu0 0
    %1040 = vmatprep.mubr.bf16.mxu0 0
    %1041 = vmatmul.mubr.bf16.gmra.mxu0 %v1006
    %v1042 = vpop.f32.mrf.mxu0
    %v1043 = vadd.f32 0.0, %v1042
    %v1044 = vpop.f32.mrf.mxu0
    %v1045 = vpop.f32.mrf.mxu0
    %v1046 = vpop.f32.mrf.mxu0
    %1047 = vdwg.mxu0
    %v1049 = vsel %vm325, %v1004, 0
    %1051 = vmatprep.subr.bf16.mxu0 0
    %1052 = vmatpush1.bf16.msra.mxu0 0
    %1053 = vmatprep.subr.bf16.mxu0 0
    %1054 = vmatpush1.bf16.msra.mxu0 0
    %1055 = vmatprep.subr.bf16.mxu0 0
    %1056 = vmatpush1.bf16.msra.mxu0 0
    %1057 = vmatprep.subr.bf16.mxu0 0
    %1058 = vmatpush1.bf16.msra.mxu0 0
    %1059 = vmatprep.subr.bf16.mxu0 0
    %1060 = vmatpush1.bf16.msra.mxu0 0
    %1061 = vmatprep.subr.bf16.mxu0 0
    %1062 = vmatpush1.bf16.msra.mxu0 0
    %1063 = vmatprep.subr.bf16.mxu0 0
    %1064 = vmatpush1.bf16.msra.mxu0 0
    %1065 = vmatprep.subr.bf16.mxu0 0
    %1066 = vmatpush1.bf16.msra.mxu0 %v838
    %1067 = vmatprep.subr.bf16.mxu0 0
    %1068 = vmatpush2.bf16.msra.mxu0 0
    %1069 = vmatprep.subr.bf16.mxu0 0
    %1070 = vmatpush2.bf16.msra.mxu0 0
    %1071 = vmatprep.subr.bf16.mxu0 0
    %1072 = vmatpush2.bf16.msra.mxu0 0
    %1073 = vmatprep.subr.bf16.mxu0 0
    %1074 = vmatpush2.bf16.msra.mxu0 0
    %1075 = vmatprep.subr.bf16.mxu0 0
    %1076 = vmatpush2.bf16.msra.mxu0 0
    %1077 = vmatprep.subr.bf16.mxu0 0
    %1078 = vmatpush2.bf16.msra.mxu0 0
    %1079 = vmatprep.subr.bf16.mxu0 0
    %1080 = vmatpush2.bf16.msra.mxu0 0
    %1081 = vmatprep.subr.bf16.mxu0 0
    %1082 = vmatpush2.bf16.msra.mxu0 0
    %1083 = vmatprep.mubr.bf16.mxu0 0
    %1084 = vmatmul.mubr.bf16.gmra.mxu0 %v1049
    %v1085 = vpop.f32.mrf.mxu0
    %v1086 = vadd.f32 0.0, %v1085
    %v1087 = vpop.f32.mrf.mxu0
    %v1088 = vpop.f32.mrf.mxu0
    %v1089 = vpop.f32.mrf.mxu0
    %1090 = vdwg.mxu0
    %1093 = vrot.lane.b32.xlu0 %v1043, 48
    %v1094 = vpop.permute.xlu0 %1093
    %1095 = vrot.lane.b32.xlu0 %v1086, 48
    %v1096 = vpop.permute.xlu0 %1095
    %vm1099 = vcmask 523648
    %1100 = vst.msk [vmem:[#allocation2] sm:$0xff] %vm1099, %v1094
    %1101 = vst.msk [vmem:[#allocation2 + $0x8] sm:$0xff] %vm1099, %v1096
    %v1102 = vld [vmem:[#allocation2] sm:$0xff]
    %v1103 = vld [vmem:[#allocation2 + $0x8] sm:$0xff]
    %v1104 = vpack.c.bf16 %v1103, %v1102
    %v1105 = vld [vmem:[%s5] sm:$0xf]
    %v1106 = vld [vmem:[%s5 + $0x4] sm:$0xf]
    %v1107 = vld [vmem:[%s5 + $0x8] sm:$0xf]
    %v1108 = vld [vmem:[%s5 + $0xc] sm:$0xf]
    %v1109 = vld [vmem:[%s5 + $0x10] sm:$0xf]
    %v1110 = vld [vmem:[%s5 + $0x14] sm:$0xf]
    %v1111 = vld [vmem:[%s5 + $0x18] sm:$0xf]
    %v1112 = vld [vmem:[%s5 + $0x1c] sm:$0xf]
    %v1121 = vunpack.c.l.b16 %v1105
    %v1122 = vunpack.c.l.b16 %v1106
    %v1123 = vunpack.c.l.b16 %v1107
    %v1124 = vunpack.c.l.b16 %v1108
    %v1125 = vunpack.c.l.b16 %v1109
    %v1126 = vunpack.c.l.b16 %v1110
    %v1127 = vunpack.c.l.b16 %v1111
    %v1128 = vunpack.c.l.b16 %v1112
    %v1129 = vpack.c.b16 %v1122, %v1121
    %v1130 = vpack.c.b16 %v1124, %v1123
    %v1131 = vpack.c.b16 %v1126, %v1125
    %v1132 = vpack.c.b16 %v1128, %v1127
    %v1138 = vsel %vm42, %v1104, 0
    %1140 = vmatprep.subr.bf16.mxu0 0
    %1141 = vmatpush1.bf16.msra.mxu0 0
    %1142 = vmatprep.subr.bf16.mxu0 0
    %1143 = vmatpush1.bf16.msra.mxu0 0
    %1144 = vmatprep.subr.bf16.mxu0 0
    %1145 = vmatpush1.bf16.msra.mxu0 0
    %1146 = vmatprep.subr.bf16.mxu0 0
    %1147 = vmatpush1.bf16.msra.mxu0 0
    %1148 = vmatprep.subr.bf16.mxu0 0
    %1149 = vmatpush1.bf16.msra.mxu0 %v1132
    %1150 = vmatprep.subr.bf16.mxu0 0
    %1151 = vmatpush1.bf16.msra.mxu0 %v1131
    %1152 = vmatprep.subr.bf16.mxu0 0
    %1153 = vmatpush1.bf16.msra.mxu0 %v1130
    %1154 = vmatprep.subr.bf16.mxu0 0
    %1155 = vmatpush1.bf16.msra.mxu0 %v1129
    %1156 = vmatprep.subr.bf16.mxu0 0
    %1157 = vmatpush2.bf16.msra.mxu0 0
    %1158 = vmatprep.subr.bf16.mxu0 0
    %1159 = vmatpush2.bf16.msra.mxu0 0
    %1160 = vmatprep.subr.bf16.mxu0 0
    %1161 = vmatpush2.bf16.msra.mxu0 0
    %1162 = vmatprep.subr.bf16.mxu0 0
    %1163 = vmatpush2.bf16.msra.mxu0 0
    %1164 = vmatprep.subr.bf16.mxu0 0
    %1165 = vmatpush2.bf16.msra.mxu0 0
    %1166 = vmatprep.subr.bf16.mxu0 0
    %1167 = vmatpush2.bf16.msra.mxu0 0
    %1168 = vmatprep.subr.bf16.mxu0 0
    %1169 = vmatpush2.bf16.msra.mxu0 0
    %1170 = vmatprep.subr.bf16.mxu0 0
    %1171 = vmatpush2.bf16.msra.mxu0 0
    %1172 = vmatprep.mubr.bf16.mxu0 0
    %1173 = vmatmul.mubr.bf16.gmra.mxu0 %v1138
    %v1174 = vpop.f32.mrf.mxu0
    %v1175 = vadd.f32 0.0, %v1174
    %v1176 = vpop.f32.mrf.mxu0
    %v1177 = vpop.f32.mrf.mxu0
    %v1178 = vadd.f32 0.0, %v1177
    %v1179 = vpop.f32.mrf.mxu0
    %1180 = vdwg.mxu0
    %v1181 = vadd.f32 %v37, %v1175
    %v1182 = vadd.f32 %v38, %v1178
    %v1183 = vld [vmem:[%s2] sm:$0x1]
    %v1184 = vmul.f32 %v1181, %v1181
    %v1185 = vmul.f32 %v1182, %v1182
    %v1186 = vsel %vm42, %v1184, 0.0
    %1187 = vadd.xlane.f32.xlu0 %v1186
    %v1188 = vpop.xlane.xlu0 %1187
    %v1189 = vsel %vm42, %v1185, 0.0
    %1190 = vadd.xlane.f32.xlu0 %v1189
    %v1191 = vpop.xlane.xlu0 %1190
    %v1192 = vmul.f32 %v1188, %v49
    %v1193 = vmul.f32 %v1191, %v49
    %v1194 = vadd.f32 %v1192, 1e-05
    %v1195 = vadd.f32 %v1193, 1e-05
    %v1196 = vrsqrt.pop %v1194
    %v1197 = vrsqrt.pop %v1195
    %v1198 = vmul.f32 %v1181, %v1196
    %v1199 = vmul.f32 %v1182, %v1197
    %v1201 = vlaneseq
    %v1202 = vshrl.u32 %v1201, 7
    %v1203 = vsub.s32 0, %v1202
    %v1204 = vrot.slane %v1183, %v1203
    %v1206 = vmul.f32 %v1198, %v1204
    %v1207 = vmul.f32 %v1199, %v1204
    %v1208 = vpack.c.bf16 %v1207, %v1206
    %v1209 = vld [vmem:[%s6] sm:$0xff]
    %v1210 = vld [vmem:[%s6 + $0x8] sm:$0xff]
    %v1211 = vld [vmem:[%s6 + $0x10] sm:$0xff]
    %v1212 = vld [vmem:[%s6 + $0x18] sm:$0xff]
    %v1213 = vld [vmem:[%s6 + $0x20] sm:$0xff]
    %v1214 = vld [vmem:[%s6 + $0x28] sm:$0xff]
    %v1215 = vld [vmem:[%s6 + $0x30] sm:$0xff]
    %v1216 = vld [vmem:[%s6 + $0x38] sm:$0xff]
    %v1225 = vunpack.c.l.b16 %v1209
    %v1226 = vunpack.c.h.b16 %v1209
    %v1227 = vunpack.c.l.b16 %v1210
    %v1228 = vunpack.c.h.b16 %v1210
    %v1229 = vunpack.c.l.b16 %v1211
    %v1230 = vunpack.c.h.b16 %v1211
    %v1231 = vunpack.c.l.b16 %v1212
    %v1232 = vunpack.c.h.b16 %v1212
    %v1233 = vunpack.c.l.b16 %v1213
    %v1234 = vunpack.c.h.b16 %v1213
    %v1235 = vunpack.c.l.b16 %v1214
    %v1236 = vunpack.c.h.b16 %v1214
    %v1237 = vunpack.c.l.b16 %v1215
    %v1238 = vunpack.c.h.b16 %v1215
    %v1239 = vunpack.c.l.b16 %v1216
    %v1240 = vunpack.c.h.b16 %v1216
    %v1241 = vpack.c.b16 %v1227, %v1225
    %v1242 = vpack.c.b16 %v1228, %v1226
    %v1243 = vpack.c.b16 %v1231, %v1229
    %v1244 = vpack.c.b16 %v1232, %v1230
    %v1245 = vpack.c.b16 %v1235, %v1233
    %v1246 = vpack.c.b16 %v1236, %v1234
    %v1247 = vpack.c.b16 %v1239, %v1237
    %v1248 = vpack.c.b16 %v1240, %v1238
    %v1258 = vsel %vm42, %v1208, 0
    %1260 = vmatprep.subr.bf16.mxu0 0
    %1261 = vmatpush1.bf16.msra.mxu0 0
    %1262 = vmatprep.subr.bf16.mxu0 0
    %1263 = vmatpush1.bf16.msra.mxu0 0
    %1264 = vmatprep.subr.bf16.mxu0 0
    %1265 = vmatpush1.bf16.msra.mxu0 0
    %1266 = vmatprep.subr.bf16.mxu0 0
    %1267 = vmatpush1.bf16.msra.mxu0 0
    %1268 = vmatprep.subr.bf16.mxu0 %v1248
    %1269 = vmatpush1.bf16.msra.mxu0 %v1247
    %1270 = vmatprep.subr.bf16.mxu0 %v1246
    %1271 = vmatpush1.bf16.msra.mxu0 %v1245
    %1272 = vmatprep.subr.bf16.mxu0 %v1244
    %1273 = vmatpush1.bf16.msra.mxu0 %v1243
    %1274 = vmatprep.subr.bf16.mxu0 %v1242
    %1275 = vmatpush1.bf16.msra.mxu0 %v1241
    %1276 = vmatprep.subr.bf16.mxu0 0
    %1277 = vmatpush2.bf16.msra.mxu0 0
    %1278 = vmatprep.subr.bf16.mxu0 0
    %1279 = vmatpush2.bf16.msra.mxu0 0
    %1280 = vmatprep.subr.bf16.mxu0 0
    %1281 = vmatpush2.bf16.msra.mxu0 0
    %1282 = vmatprep.subr.bf16.mxu0 0
    %1283 = vmatpush2.bf16.msra.mxu0 0
    %1284 = vmatprep.subr.bf16.mxu0 0
    %1285 = vmatpush2.bf16.msra.mxu0 0
    %1286 = vmatprep.subr.bf16.mxu0 0
    %1287 = vmatpush2.bf16.msra.mxu0 0
    %1288 = vmatprep.subr.bf16.mxu0 0
    %1289 = vmatpush2.bf16.msra.mxu0 0
    %1290 = vmatprep.subr.bf16.mxu0 0
    %1291 = vmatpush2.bf16.msra.mxu0 0
    %1292 = vmatprep.mubr.bf16.mxu0 0
    %1293 = vmatmul.mubr.bf16.gmra.mxu0 %v1258
    %v1294 = vpop.f32.mrf.mxu0
    %v1295 = vadd.f32 0.0, %v1294
    %v1296 = vpop.f32.mrf.mxu0
    %v1297 = vadd.f32 0.0, %v1296
    %v1298 = vpop.f32.mrf.mxu0
    %v1299 = vadd.f32 0.0, %v1298
    %v1300 = vpop.f32.mrf.mxu0
    %v1301 = vadd.f32 0.0, %v1300
    %1302 = vdwg.mxu0
    %v1303 = vxor.u32 %v1295, 2147483648
    %v1304 = vxor.u32 %v1299, 2147483648
    %v1305 = vmul.f32 %v1303, 1.442695
    %v1306 = vpow.pop %v1305
    %v1307 = vmul.f32 %v1304, 1.442695
    %v1308 = vpow.pop %v1307
    %v1309 = vadd.f32 %v1306, 1.0
    %v1310 = vadd.f32 %v1308, 1.0
    %v1311 = vrcp.pop %v1309
    %v1312 = vmul.f32 1.0, %v1311
    %v1313 = vrcp.pop %v1310
    %v1314 = vmul.f32 1.0, %v1313
    %v1315 = vmul.f32 %v1295, %v1312
    %v1316 = vmul.f32 %v1299, %v1314
    %v1317 = vmul.f32 %v1315, %v1297
    %v1318 = vmul.f32 %v1316, %v1301
    %v1319 = vpack.c.bf16 %v1318, %v1317
    %v1320 = vld [vmem:[%s7] sm:$0xf]
    %v1321 = vld [vmem:[%s7 + $0x4] sm:$0xf]
    %v1322 = vld [vmem:[%s7 + $0x8] sm:$0xf]
    %v1323 = vld [vmem:[%s7 + $0xc] sm:$0xf]
    %v1324 = vld [vmem:[%s7 + $0x10] sm:$0xf]
    %v1325 = vld [vmem:[%s7 + $0x14] sm:$0xf]
    %v1326 = vld [vmem:[%s7 + $0x18] sm:$0xf]
    %v1327 = vld [vmem:[%s7 + $0x1c] sm:$0xf]
    %v1328 = vld [vmem:[%s7 + $0x20] sm:$0xf]
    %v1329 = vld [vmem:[%s7 + $0x24] sm:$0xf]
    %v1330 = vld [vmem:[%s7 + $0x28] sm:$0xf]
    %v1331 = vld [vmem:[%s7 + $0x2c] sm:$0xf]
    %v1332 = vld [vmem:[%s7 + $0x30] sm:$0xf]
    %v1333 = vld [vmem:[%s7 + $0x34] sm:$0xf]
    %v1334 = vld [vmem:[%s7 + $0x38] sm:$0xf]
    %v1335 = vld [vmem:[%s7 + $0x3c] sm:$0xf]
    %v1352 = vunpack.c.l.b16 %v1320
    %v1353 = vunpack.c.l.b16 %v1321
    %v1354 = vunpack.c.l.b16 %v1322
    %v1355 = vunpack.c.l.b16 %v1323
    %v1356 = vunpack.c.l.b16 %v1324
    %v1357 = vunpack.c.l.b16 %v1325
    %v1358 = vunpack.c.l.b16 %v1326
    %v1359 = vunpack.c.l.b16 %v1327
    %v1360 = vunpack.c.l.b16 %v1328
    %v1361 = vunpack.c.l.b16 %v1329
    %v1362 = vunpack.c.l.b16 %v1330
    %v1363 = vunpack.c.l.b16 %v1331
    %v1364 = vunpack.c.l.b16 %v1332
    %v1365 = vunpack.c.l.b16 %v1333
    %v1366 = vunpack.c.l.b16 %v1334
    %v1367 = vunpack.c.l.b16 %v1335
    %v1368 = vpack.c.b16 %v1353, %v1352
    %v1369 = vpack.c.b16 %v1355, %v1354
    %v1370 = vpack.c.b16 %v1357, %v1356
    %v1371 = vpack.c.b16 %v1359, %v1358
    %v1372 = vpack.c.b16 %v1361, %v1360
    %v1373 = vpack.c.b16 %v1363, %v1362
    %v1374 = vpack.c.b16 %v1365, %v1364
    %v1375 = vpack.c.b16 %v1367, %v1366
    %1384 = vmatprep.subr.bf16.mxu0 0
    %1385 = vmatpush1.bf16.msra.mxu0 %v1375
    %1386 = vmatprep.subr.bf16.mxu0 0
    %1387 = vmatpush1.bf16.msra.mxu0 %v1374
    %1388 = vmatprep.subr.bf16.mxu0 0
    %1389 = vmatpush1.bf16.msra.mxu0 %v1373
    %1390 = vmatprep.subr.bf16.mxu0 0
    %1391 = vmatpush1.bf16.msra.mxu0 %v1372
    %1392 = vmatprep.subr.bf16.mxu0 0
    %1393 = vmatpush1.bf16.msra.mxu0 %v1371
    %1394 = vmatprep.subr.bf16.mxu0 0
    %1395 = vmatpush1.bf16.msra.mxu0 %v1370
    %1396 = vmatprep.subr.bf16.mxu0 0
    %1397 = vmatpush1.bf16.msra.mxu0 %v1369
    %1398 = vmatprep.subr.bf16.mxu0 0
    %1399 = vmatpush1.bf16.msra.mxu0 %v1368
    %1400 = vmatprep.subr.bf16.mxu0 0
    %1401 = vmatpush2.bf16.msra.mxu0 0
    %1402 = vmatprep.subr.bf16.mxu0 0
    %1403 = vmatpush2.bf16.msra.mxu0 0
    %1404 = vmatprep.subr.bf16.mxu0 0
    %1405 = vmatpush2.bf16.msra.mxu0 0
    %1406 = vmatprep.subr.bf16.mxu0 0
    %1407 = vmatpush2.bf16.msra.mxu0 0
    %1408 = vmatprep.subr.bf16.mxu0 0
    %1409 = vmatpush2.bf16.msra.mxu0 0
    %1410 = vmatprep.subr.bf16.mxu0 0
    %1411 = vmatpush2.bf16.msra.mxu0 0
    %1412 = vmatprep.subr.bf16.mxu0 0
    %1413 = vmatpush2.bf16.msra.mxu0 0
    %1414 = vmatprep.subr.bf16.mxu0 0
    %1415 = vmatpush2.bf16.msra.mxu0 0
    %1416 = vmatprep.mubr.bf16.mxu0 0
    %1417 = vmatmul.mubr.bf16.gmra.mxu0 %v1319
    %v1418 = vpop.f32.mrf.mxu0
    %v1419 = vadd.f32 0.0, %v1418
    %v1420 = vpop.f32.mrf.mxu0
    %v1421 = vpop.f32.mrf.mxu0
    %v1422 = vadd.f32 0.0, %v1421
    %v1423 = vpop.f32.mrf.mxu0
    %1424 = vdwg.mxu0
    %v1425 = vadd.f32 %v1181, %v1419
    %v1426 = vadd.f32 %v1182, %v1422
    %1427 = vst.msk [vmem:[#allocation3] sm:$0xff] %vm42, %v1425
    %1428 = vst.msk [vmem:[#allocation3 + $0x8] sm:$0xff] %vm42, %v1426
    // Predicated region
    $region42: #{smollm2_block_forward.1} parent=1 // pred_check
      _
    $region43: #{smollm2_block_forward.1} parent=1 // pred_check_branch
      %1430 = sbr.rel (0) target = $region45
    $region44: #{smollm2_block_forward.1} parent=1 // pred_region
      %s1432 = ssub.s32 256, 256
      %1433 = vsyncadd [#allocation4], %s1432
      %s1434 = sshll.u32 [#allocation3], 4
      %s1435 = int_to_ptr.vmem [resolvable:$true] %s1434
      %1440 = dma.vmem_to_hbm [thread:$0]  %s1435, 256, %s10, [#allocation4], 128, 128, 8
    $region45: #{smollm2_block_forward.1} parent=1 // pred_fallthru
      _
    // Predicated region
    $region46: #{smollm2_block_forward.1} parent=1 // pred_check
      _
    $region47: #{smollm2_block_forward.1} parent=1 // pred_check_branch
      %1442 = sbr.rel (0) target = $region49
    $region48: #{smollm2_block_forward.1} parent=1 // pred_region
      %1443 = dma.done [#allocation4], 256
    $region49: #{smollm2_block_forward.1} parent=1 // pred_fallthru
      _
    %1444 = vsyncpa [#allocation4], 1

</llo_original>
